<compile_context>
chip_gen: v5e
topology: v5e:2x2
jax: 0.10.0
libtpu: 0.0.40
codegen_flags: <defaults>
</compile_context>

<pallas_src>
import jax
import jax.numpy as jnp
from jax.experimental import pallas as pl
from jax.experimental.pallas import tpu as pltpu


# ----------------------------- Pallas kernel ------------------------------ #

def _lstm_cell_kernel(x_ref, h_ref, c_ref, wx_ref, wh_ref, b_ref,
                      h_out_ref, c_out_ref):
    """One fused LSTM cell step on a [Bb, F] input tile and [Bb, H] state tile."""
    H = c_ref.shape[-1]
    # Fused gate pre-activations: 2 MXU matmuls + 1 bias add -> [Bb, 4H] f32.
    gates = (
        jnp.dot(x_ref[...], wx_ref[...], preferred_element_type=jnp.float32)
        + jnp.dot(h_ref[...], wh_ref[...], preferred_element_type=jnp.float32)
        + b_ref[...]
    )
    i = jax.nn.sigmoid(gates[:, 0 * H:1 * H])
    f = jax.nn.sigmoid(gates[:, 1 * H:2 * H])
    g = jnp.tanh(gates[:, 2 * H:3 * H])
    o = jax.nn.sigmoid(gates[:, 3 * H:4 * H])

    c_new = f * c_ref[...] + i * g          # f32 state update
    h_new = o * jnp.tanh(c_new)             # f32 elementwise (safe on v5e too)

    h_out_ref[...] = h_new.astype(h_out_ref.dtype)   # bf16 by default
    c_out_ref[...] = c_new.astype(c_out_ref.dtype)   # f32


# -------------------- One-time parameter fusion (hoisted) ------------------ #

def fuse_lstm_params(params, *, compute_dtype=jnp.bfloat16):
    """Fuse the four gate Linears once; reuse the result across every step.

    Args:
      params: dict with 'w_i','w_f','w_g','w_o' of shape [H, F+H] and
        'b_i','b_f','b_g','b_o' of shape [H] (PyTorch nn.Linear layout).
      compute_dtype: operand dtype for the MXU matmuls (bf16 default).

    Returns:
      dict with 'wx' [F, 4H], 'wh' [H, 4H] (compute_dtype) and 'b' [1, 4H] f32.
    """
    H = params["w_i"].shape[0]
    F = params["w_i"].shape[1] - H
    w_all = jnp.concatenate(
        [params["w_i"], params["w_f"], params["w_g"], params["w_o"]], axis=0)
    wx = jnp.transpose(w_all[:, :F]).astype(compute_dtype)          # [F, 4H]
    wh = jnp.transpose(w_all[:, F:]).astype(compute_dtype)          # [H, 4H]
    b = jnp.concatenate(
        [params["b_i"], params["b_f"], params["b_g"], params["b_o"]]
    ).reshape(1, 4 * H).astype(jnp.float32)                          # [1, 4H]
    return {"wx": wx, "wh": wh, "b": b}


# -------------------------- Hardware-aware tiling --------------------------- #

def _vmem_capacity_bytes():
    try:
        return int(pltpu.get_tpu_info().vmem_capacity_bytes)
    except Exception:
        return 64 * 1024 * 1024          # conservative (v7x-sized) fallback


def _num_tensorcores():
    try:
        kind = jax.devices()[0].device_kind.lower()
        return 2 if "v7" in kind else 1  # v7x: 2 TCs/chip; v5e/v6e: 1
    except Exception:
        return 1


def _divisors_desc(n):
    ds = set()
    i = 1
    while i * i <= n:
        if n % i == 0:
            ds.add(i)
            ds.add(n // i)
        i += 1
    return sorted(ds, reverse=True)


def _choose_block_b(B, F, H, compute_itemsize, tile_budget_bytes, num_cores):
    """Largest batch tile whose VMEM footprint fits the budget; prefers a grid
    that is a multiple of the core count and multiples of 8 rows."""
    # Per-row VMEM bytes of the double-buffered activation tiles + f32 temps.
    per_row = (
        2 * F * compute_itemsize          # x
        + 2 * H * compute_itemsize        # h
        + 2 * H * 4                       # c (f32)
        + 2 * H * compute_itemsize        # h' out
        + 2 * H * 4                       # c' out (f32)
        + 4 * H * 4                       # fused gates temp (f32)
        + 4 * H * 4                       # gate slices / elementwise headroom
    )
    cap_rows = max(1, tile_budget_bytes // per_row)

    cands = [d for d in _divisors_desc(B) if d <= cap_rows]
    # (8,128) constraint: batch tile must be a multiple of 8 unless it is B.
    legal = [d for d in cands if d % 8 == 0 or d == B]
    cands = legal if legal else [B]
    if num_cores > 1:
        pref = [d for d in cands if (B // d) % num_cores == 0]
        if pref:
            cands = pref
    return cands[0]


# ------------------------------- Wrapper ----------------------------------- #

def lstm_cell_forward(x, hc, fused_params, *, block_b=None, donate_state=False):
    """Pallas LSTMCell.forward using pre-fused parameters (see fuse_lstm_params).

    Args:
      x: [B, F] input.
      hc: tuple (h, c), each [B, H].
      fused_params: dict with 'wx' [F,4H], 'wh' [H,4H], 'b' [1,4H].
      block_b: optional batch tile (must divide B); auto-picked if None.
      donate_state: alias the (cast) h/c inputs to the outputs.

    Returns:
      (h_new [B, H] in the compute dtype, c_new [B, H] float32).
    """
    h, c = hc
    wx, wh, b = fused_params["wx"], fused_params["wh"], fused_params["b"]
    compute_dtype = wx.dtype
    itemsize = jnp.dtype(compute_dtype).itemsize
    B, F = x.shape
    H = wh.shape[0]
    assert wx.shape == (F, 4 * H) and b.shape == (1, 4 * H)

    x_in = x.astype(compute_dtype)
    h_in = h.astype(compute_dtype)
    c_in = c.astype(jnp.float32)

    vmem_cap = _vmem_capacity_bytes()
    num_cores = _num_tensorcores()
    # Scoped-VMEM limit we request (leave headroom below physical capacity).
    vmem_limit = max(32 * 1024 * 1024, vmem_cap - 16 * 1024 * 1024)
    tile_budget = int(0.8 * vmem_limit)

    # Single-buffered fused weights + bias must fit before tiling the batch.
    weight_bytes = (F + H) * 4 * H * itemsize + 4 * H * 4
    assert weight_bytes < tile_budget, (
        "Fused LSTM weights do not fit VMEM; a K-reduction grid axis is "
        "required for this hidden size (see TODO at top of file).")

    if block_b is None:
        block_b = _choose_block_b(B, F, H, itemsize,
                                  tile_budget - weight_bytes, num_cores)
    assert B % block_b == 0, "block_b must divide the batch size"
    grid = (B // block_b,)

    def build(single_buffer_weights):
        if single_buffer_weights:
            def wspec(shape):
                return pl.BlockSpec(shape, lambda bb: (0, 0),
                                    pipeline_mode=pl.Buffered(1))
        else:
            def wspec(shape):
                return pl.BlockSpec(shape, lambda bb: (0, 0))
        kwargs = {}
        if donate_state:
            # h input (idx 1) -> h' output (idx 0); c input (idx 2) -> c' (idx 1).
            kwargs["input_output_aliases"] = {1: 0, 2: 1}
        return pl.pallas_call(
            _lstm_cell_kernel,
            out_shape=(
                jax.ShapeDtypeStruct((B, H), compute_dtype),   # h' (bf16 default)
                jax.ShapeDtypeStruct((B, H), jnp.float32),     # c' (f32)
            ),
            grid_spec=pltpu.PrefetchScalarGridSpec(
                num_scalar_prefetch=0,
                grid=grid,
                in_specs=[
                    pl.BlockSpec((block_b, F), lambda bb: (bb, 0)),   # x
                    pl.BlockSpec((block_b, H), lambda bb: (bb, 0)),   # h
                    pl.BlockSpec((block_b, H), lambda bb: (bb, 0)),   # c
                    wspec((F, 4 * H)),                                # Wx (fused)
                    wspec((H, 4 * H)),                                # Wh (fused)
                    wspec((1, 4 * H)),                                # fused bias
                ],
                out_specs=(
                    pl.BlockSpec((block_b, H), lambda bb: (bb, 0)),   # h'
                    pl.BlockSpec((block_b, H), lambda bb: (bb, 0)),   # c'
                ),
            ),
            compiler_params=pltpu.CompilerParams(
                dimension_semantics=("parallel",),
                vmem_limit_bytes=int(vmem_limit)),
            **kwargs,
        )

    try:
        h_out, c_out = build(True)(x_in, h_in, c_in, wx, wh, b)
    except Exception:
        # Fallback for jax versions without pipeline_mode=pl.Buffered support.
        h_out, c_out = build(False)(x_in, h_in, c_in, wx, wh, b)
    return h_out, c_out


# ------------------------- Pure-JAX reference ------------------------------ #

def lstm_cell_forward_ref(x, hc, params):
    h, c = hc
    xh = jnp.concatenate([x, h], axis=-1)
    i = jax.nn.sigmoid(xh @ params["w_i"].T + params["b_i"])
    f = jax.nn.sigmoid(xh @ params["w_f"].T + params["b_f"])
    g = jnp.tanh(xh @ params["w_g"].T + params["b_g"])
    o = jax.nn.sigmoid(xh @ params["w_o"].T + params["b_o"])
    c_new = f * c + i * g
    h_new = o * jnp.tanh(c_new)
    return h_new, c_new


# --------------------------------- Main ------------------------------------ #

def _init_params(key, input_size, hidden_size):
    """Deterministic nn.Linear-style init (uniform +/- 1/sqrt(F+H))."""
    bound = 1.0 / jnp.sqrt(float(input_size + hidden_size))
    names = ("i", "f", "g", "o")
    keys = jax.random.split(key, 2 * len(names))
    params = {}
    for idx, n in enumerate(names):
        kw, kb = keys[2 * idx], keys[2 * idx + 1]
        params[f"w_{n}"] = jax.random.uniform(
            kw, (hidden_size, input_size + hidden_size), jnp.float32,
            -bound, bound)
        params[f"b_{n}"] = jax.random.uniform(
            kb, (hidden_size,), jnp.float32, -bound, bound)
    return params


if __name__ == "__main__":
    # Small but lane-dense shapes: B multiple of 8, F/H multiples of 128.
    B, F, H = 16, 128, 128

    key = jax.random.PRNGKey(0)
    key, kx, kh, kc = jax.random.split(key, 4)
    x = jax.random.normal(kx, (B, F), jnp.float32)
    h0 = jax.random.normal(kh, (B, H), jnp.float32)
    c0 = jax.random.normal(kc, (B, H), jnp.float32)
    params = _init_params(key, F, H)

    h_ref, c_ref = lstm_cell_forward_ref(x, (h0, c0), params)

    # Default bf16 fast path. Weights are fused/cast ONCE (amortized across a
    # sequence loop); block_b / grid are picked per generation automatically.
    fused_bf16 = fuse_lstm_params(params, compute_dtype=jnp.bfloat16)
    h1, c1 = lstm_cell_forward(x, (h0, c0), fused_bf16)
    h1 = jax.block_until_ready(h1)
    c1 = jax.block_until_ready(c1)
    assert h1.shape == (B, H) and c1.shape == (B, H)
    assert h1.dtype == jnp.bfloat16 and c1.dtype == jnp.float32
    assert jnp.allclose(h1.astype(jnp.float32), h_ref, atol=3e-2, rtol=3e-2)
    assert jnp.allclose(c1, c_ref, atol=3e-2, rtol=3e-2)

    # Exact f32 path (same kernel, f32 operands) for a tight correctness check.
    fused_f32 = fuse_lstm_params(params, compute_dtype=jnp.float32)
    h2, c2 = lstm_cell_forward(x, (h0, c0), fused_f32)
    h2 = jax.block_until_ready(h2)
    c2 = jax.block_until_ready(c2)
    assert jnp.allclose(h2, h_ref, atol=1e-5, rtol=1e-5)
    assert jnp.allclose(c2, c_ref, atol=1e-5, rtol=1e-5)

    print("KERNEL_OK")
</pallas_src>

<mosaic_0001>
module attributes {stable_mosaic.version = 11 : i64} {
  func.func @_lstm_cell_kernel(%arg0: i32, %arg1: memref<16x128xbf16, #tpu.memory_space<vmem>>, %arg2: memref<16x128xbf16, #tpu.memory_space<vmem>>, %arg3: memref<16x128xf32, #tpu.memory_space<vmem>>, %arg4: memref<128x512xbf16, #tpu.memory_space<vmem>>, %arg5: memref<128x512xbf16, #tpu.memory_space<vmem>>, %arg6: memref<1x512xf32, #tpu.memory_space<vmem>>, %arg7: memref<16x128xbf16, #tpu.memory_space<vmem>>, %arg8: memref<16x128xf32, #tpu.memory_space<vmem>>) attributes {dimension_semantics = [#tpu.dimension_semantics<parallel>], iteration_bounds = array<i64: 1>, scalar_prefetch = 0 : i64, scratch_operands = 0 : i64, tpu.core_type = #tpu.core_type<tc>, window_params = [{transform_indices = @transform_0, window_bounds = array<i64: 16, 128>}, {transform_indices = @transform_1, window_bounds = array<i64: 16, 128>}, {transform_indices = @transform_2, window_bounds = array<i64: 16, 128>}, {pipeline_mode = #tpu.pipeline_mode<synchronous>, transform_indices = @transform_3, window_bounds = array<i64: 128, 512>}, {pipeline_mode = #tpu.pipeline_mode<synchronous>, transform_indices = @transform_4, window_bounds = array<i64: 128, 512>}, {pipeline_mode = #tpu.pipeline_mode<synchronous>, transform_indices = @transform_5, window_bounds = array<i64: 1, 512>}, {transform_indices = @transform_6, window_bounds = array<i64: 16, 128>}, {transform_indices = @transform_7, window_bounds = array<i64: 16, 128>}]} {
    %c0 = arith.constant 0 : index
    %c0_0 = arith.constant 0 : index
    %0 = vector.load %arg1[%c0, %c0_0] : memref<16x128xbf16, #tpu.memory_space<vmem>>, vector<16x128xbf16>
    %c0_1 = arith.constant 0 : index
    %c0_2 = arith.constant 0 : index
    %1 = vector.load %arg4[%c0_1, %c0_2] : memref<128x512xbf16, #tpu.memory_space<vmem>>, vector<128x512xbf16>
    %cst = arith.constant dense<0.000000e+00> : vector<16x512xf32>
    %2 = tpu.matmul %0, %1, %cst {dimension_numbers = #tpu.dot_dimension_numbers<[1], [0], [0], [1], [0, 0, 1, 1], [], []>} : vector<16x128xbf16>, vector<128x512xbf16>, vector<16x512xf32> -> vector<16x512xf32>
    %c0_3 = arith.constant 0 : index
    %c0_4 = arith.constant 0 : index
    %3 = vector.load %arg2[%c0_3, %c0_4] : memref<16x128xbf16, #tpu.memory_space<vmem>>, vector<16x128xbf16>
    %c0_5 = arith.constant 0 : index
    %c0_6 = arith.constant 0 : index
    %4 = vector.load %arg5[%c0_5, %c0_6] : memref<128x512xbf16, #tpu.memory_space<vmem>>, vector<128x512xbf16>
    %cst_7 = arith.constant dense<0.000000e+00> : vector<16x512xf32>
    %5 = tpu.matmul %3, %4, %cst_7 {dimension_numbers = #tpu.dot_dimension_numbers<[1], [0], [0], [1], [0, 0, 1, 1], [], []>} : vector<16x128xbf16>, vector<128x512xbf16>, vector<16x512xf32> -> vector<16x512xf32>
    %6 = arith.addf %2, %5 : vector<16x512xf32>
    %c0_8 = arith.constant 0 : index
    %c0_9 = arith.constant 0 : index
    %7 = vector.load %arg6[%c0_8, %c0_9] : memref<1x512xf32, #tpu.memory_space<vmem>>, vector<1x512xf32>
    %8 = vector.broadcast %7 : vector<1x512xf32> to vector<16x512xf32>
    %9 = arith.addf %6, %8 : vector<16x512xf32>
    %10 = vector.extract_strided_slice %9 {offsets = [0, 0], sizes = [16, 128], strides = [1, 1]} : vector<16x512xf32> to vector<16x128xf32>
    %11 = arith.negf %10 : vector<16x128xf32>
    %12 = math.exp %11 : vector<16x128xf32>
    %cst_10 = arith.constant 1.000000e+00 : f32
    %13 = vector.broadcast %cst_10 : f32 to vector<16x128xf32>
    %14 = arith.addf %13, %12 : vector<16x128xf32>
    %15 = arith.divf %13, %14 : vector<16x128xf32>
    %16 = vector.extract_strided_slice %9 {offsets = [0, 128], sizes = [16, 128], strides = [1, 1]} : vector<16x512xf32> to vector<16x128xf32>
    %17 = arith.negf %16 : vector<16x128xf32>
    %18 = math.exp %17 : vector<16x128xf32>
    %cst_11 = arith.constant 1.000000e+00 : f32
    %19 = vector.broadcast %cst_11 : f32 to vector<16x128xf32>
    %20 = arith.addf %19, %18 : vector<16x128xf32>
    %21 = arith.divf %19, %20 : vector<16x128xf32>
    %22 = vector.extract_strided_slice %9 {offsets = [0, 256], sizes = [16, 128], strides = [1, 1]} : vector<16x512xf32> to vector<16x128xf32>
    %23 = math.tanh %22 : vector<16x128xf32>
    %24 = vector.extract_strided_slice %9 {offsets = [0, 384], sizes = [16, 128], strides = [1, 1]} : vector<16x512xf32> to vector<16x128xf32>
    %25 = arith.negf %24 : vector<16x128xf32>
    %26 = math.exp %25 : vector<16x128xf32>
    %cst_12 = arith.constant 1.000000e+00 : f32
    %27 = vector.broadcast %cst_12 : f32 to vector<16x128xf32>
    %28 = arith.addf %27, %26 : vector<16x128xf32>
    %29 = arith.divf %27, %28 : vector<16x128xf32>
    %c0_13 = arith.constant 0 : index
    %c0_14 = arith.constant 0 : index
    %30 = vector.load %arg3[%c0_13, %c0_14] : memref<16x128xf32, #tpu.memory_space<vmem>>, vector<16x128xf32>
    %31 = arith.mulf %21, %30 : vector<16x128xf32>
    %32 = arith.mulf %15, %23 : vector<16x128xf32>
    %33 = arith.addf %31, %32 : vector<16x128xf32>
    %34 = math.tanh %33 : vector<16x128xf32>
    %35 = arith.mulf %29, %34 : vector<16x128xf32>
    %36 = arith.truncf %35 : vector<16x128xf32> to vector<16x128xbf16>
    %c0_15 = arith.constant 0 : index
    %c0_16 = arith.constant 0 : index
    %37 = vector.load %arg7[%c0_15, %c0_16] : memref<16x128xbf16, #tpu.memory_space<vmem>>, vector<16x128xbf16>
    tpu.vector_store %arg7[%c0_15, %c0_16], %36 {strides = array<i32>} : memref<16x128xbf16, #tpu.memory_space<vmem>>, vector<16x128xbf16>,
    %c0_17 = arith.constant 0 : index
    %c0_18 = arith.constant 0 : index
    %38 = vector.load %arg8[%c0_17, %c0_18] : memref<16x128xf32, #tpu.memory_space<vmem>>, vector<16x128xf32>
    tpu.vector_store %arg8[%c0_17, %c0_18], %33 {strides = array<i32>} : memref<16x128xf32, #tpu.memory_space<vmem>>, vector<16x128xf32>,
    return
  }
  func.func @transform_0(%arg0: i32) -> (i32, i32) {
    %c0_i32 = arith.constant 0 : i32
    %c0_i32_0 = arith.constant 0 : i32
    return %arg0, %c0_i32 : i32, i32
  }
  func.func @transform_1(%arg0: i32) -> (i32, i32) {
    %c0_i32 = arith.constant 0 : i32
    %c0_i32_0 = arith.constant 0 : i32
    return %arg0, %c0_i32 : i32, i32
  }
  func.func @transform_2(%arg0: i32) -> (i32, i32) {
    %c0_i32 = arith.constant 0 : i32
    %c0_i32_0 = arith.constant 0 : i32
    return %arg0, %c0_i32 : i32, i32
  }
  func.func @transform_3(%arg0: i32) -> (i32, i32) {
    %c0_i32 = arith.constant 0 : i32
    %c0_i32_0 = arith.constant 0 : i32
    %c0_i32_1 = arith.constant 0 : i32
    return %c0_i32, %c0_i32_0 : i32, i32
  }
  func.func @transform_4(%arg0: i32) -> (i32, i32) {
    %c0_i32 = arith.constant 0 : i32
    %c0_i32_0 = arith.constant 0 : i32
    %c0_i32_1 = arith.constant 0 : i32
    return %c0_i32, %c0_i32_0 : i32, i32
  }
  func.func @transform_5(%arg0: i32) -> (i32, i32) {
    %c0_i32 = arith.constant 0 : i32
    %c0_i32_0 = arith.constant 0 : i32
    %c0_i32_1 = arith.constant 0 : i32
    return %c0_i32, %c0_i32_0 : i32, i32
  }
  func.func @transform_6(%arg0: i32) -> (i32, i32) {
    %c0_i32 = arith.constant 0 : i32
    %c0_i32_0 = arith.constant 0 : i32
    return %arg0, %c0_i32 : i32, i32
  }
  func.func @transform_7(%arg0: i32) -> (i32, i32) {
    %c0_i32 = arith.constant 0 : i32
    %c0_i32_0 = arith.constant 0 : i32
    return %arg0, %c0_i32 : i32, i32
  }
}

module attributes {stable_mosaic.version = 11 : i64} {
  func.func @_lstm_cell_kernel(%arg0: i32, %arg1: memref<16x128xbf16, #tpu.memory_space<vmem>>, %arg2: memref<16x128xbf16, #tpu.memory_space<vmem>>, %arg3: memref<16x128xf32, #tpu.memory_space<vmem>>, %arg4: memref<128x512xbf16, #tpu.memory_space<vmem>>, %arg5: memref<128x512xbf16, #tpu.memory_space<vmem>>, %arg6: memref<1x512xf32, #tpu.memory_space<vmem>>, %arg7: memref<16x128xbf16, #tpu.memory_space<vmem>>, %arg8: memref<16x128xf32, #tpu.memory_space<vmem>>) attributes {dimension_semantics = [#tpu.dimension_semantics<parallel>], iteration_bounds = array<i64: 1>, scalar_prefetch = 0 : i64, scratch_operands = 0 : i64, tpu.core_type = #tpu.core_type<tc>, window_params = [{transform_indices = @transform_0, window_bounds = array<i64: 16, 128>}, {transform_indices = @transform_1, window_bounds = array<i64: 16, 128>}, {transform_indices = @transform_2, window_bounds = array<i64: 16, 128>}, {pipeline_mode = #tpu.pipeline_mode<synchronous>, transform_indices = @transform_3, window_bounds = array<i64: 128, 512>}, {pipeline_mode = #tpu.pipeline_mode<synchronous>, transform_indices = @transform_4, window_bounds = array<i64: 128, 512>}, {pipeline_mode = #tpu.pipeline_mode<synchronous>, transform_indices = @transform_5, window_bounds = array<i64: 1, 512>}, {transform_indices = @transform_6, window_bounds = array<i64: 16, 128>}, {transform_indices = @transform_7, window_bounds = array<i64: 16, 128>}]} {
    %c0 = arith.constant 0 : index
    %c0_0 = arith.constant 0 : index
    %0 = vector.load %arg1[%c0, %c0_0] : memref<16x128xbf16, #tpu.memory_space<vmem>>, vector<16x128xbf16>
    %c0_1 = arith.constant 0 : index
    %c0_2 = arith.constant 0 : index
    %1 = vector.load %arg4[%c0_1, %c0_2] : memref<128x512xbf16, #tpu.memory_space<vmem>>, vector<128x512xbf16>
    %cst = arith.constant dense<0.000000e+00> : vector<16x512xf32>
    %2 = tpu.matmul %0, %1, %cst {dimension_numbers = #tpu.dot_dimension_numbers<[1], [0], [0], [1], [0, 0, 1, 1], [], []>} : vector<16x128xbf16>, vector<128x512xbf16>, vector<16x512xf32> -> vector<16x512xf32>
    %c0_3 = arith.constant 0 : index
    %c0_4 = arith.constant 0 : index
    %3 = vector.load %arg2[%c0_3, %c0_4] : memref<16x128xbf16, #tpu.memory_space<vmem>>, vector<16x128xbf16>
    %c0_5 = arith.constant 0 : index
    %c0_6 = arith.constant 0 : index
    %4 = vector.load %arg5[%c0_5, %c0_6] : memref<128x512xbf16, #tpu.memory_space<vmem>>, vector<128x512xbf16>
    %cst_7 = arith.constant dense<0.000000e+00> : vector<16x512xf32>
    %5 = tpu.matmul %3, %4, %cst_7 {dimension_numbers = #tpu.dot_dimension_numbers<[1], [0], [0], [1], [0, 0, 1, 1], [], []>} : vector<16x128xbf16>, vector<128x512xbf16>, vector<16x512xf32> -> vector<16x512xf32>
    %6 = arith.addf %2, %5 : vector<16x512xf32>
    %c0_8 = arith.constant 0 : index
    %c0_9 = arith.constant 0 : index
    %7 = vector.load %arg6[%c0_8, %c0_9] : memref<1x512xf32, #tpu.memory_space<vmem>>, vector<1x512xf32>
    %8 = vector.broadcast %7 : vector<1x512xf32> to vector<16x512xf32>
    %9 = arith.addf %6, %8 : vector<16x512xf32>
    %10 = vector.extract_strided_slice %9 {offsets = [0, 0], sizes = [16, 128], strides = [1, 1]} : vector<16x512xf32> to vector<16x128xf32>
    %11 = arith.negf %10 : vector<16x128xf32>
    %12 = math.exp %11 : vector<16x128xf32>
    %cst_10 = arith.constant 1.000000e+00 : f32
    %13 = vector.broadcast %cst_10 : f32 to vector<16x128xf32>
    %14 = arith.addf %13, %12 : vector<16x128xf32>
    %15 = arith.divf %13, %14 : vector<16x128xf32>
    %16 = vector.extract_strided_slice %9 {offsets = [0, 128], sizes = [16, 128], strides = [1, 1]} : vector<16x512xf32> to vector<16x128xf32>
    %17 = arith.negf %16 : vector<16x128xf32>
    %18 = math.exp %17 : vector<16x128xf32>
    %cst_11 = arith.constant 1.000000e+00 : f32
    %19 = vector.broadcast %cst_11 : f32 to vector<16x128xf32>
    %20 = arith.addf %19, %18 : vector<16x128xf32>
    %21 = arith.divf %19, %20 : vector<16x128xf32>
    %22 = vector.extract_strided_slice %9 {offsets = [0, 256], sizes = [16, 128], strides = [1, 1]} : vector<16x512xf32> to vector<16x128xf32>
    %23 = math.tanh %22 : vector<16x128xf32>
    %24 = vector.extract_strided_slice %9 {offsets = [0, 384], sizes = [16, 128], strides = [1, 1]} : vector<16x512xf32> to vector<16x128xf32>
    %25 = arith.negf %24 : vector<16x128xf32>
    %26 = math.exp %25 : vector<16x128xf32>
    %cst_12 = arith.constant 1.000000e+00 : f32
    %27 = vector.broadcast %cst_12 : f32 to vector<16x128xf32>
    %28 = arith.addf %27, %26 : vector<16x128xf32>
    %29 = arith.divf %27, %28 : vector<16x128xf32>
    %c0_13 = arith.constant 0 : index
    %c0_14 = arith.constant 0 : index
    %30 = vector.load %arg3[%c0_13, %c0_14] : memref<16x128xf32, #tpu.memory_space<vmem>>, vector<16x128xf32>
    %31 = arith.mulf %21, %30 : vector<16x128xf32>
    %32 = arith.mulf %15, %23 : vector<16x128xf32>
    %33 = arith.addf %31, %32 : vector<16x128xf32>
    %34 = math.tanh %33 : vector<16x128xf32>
    %35 = arith.mulf %29, %34 : vector<16x128xf32>
    %36 = arith.truncf %35 : vector<16x128xf32> to vector<16x128xbf16>
    %c0_15 = arith.constant 0 : index
    %c0_16 = arith.constant 0 : index
    %37 = vector.load %arg7[%c0_15, %c0_16] : memref<16x128xbf16, #tpu.memory_space<vmem>>, vector<16x128xbf16>
    tpu.vector_store %arg7[%c0_15, %c0_16], %36 {strides = array<i32>} : memref<16x128xbf16, #tpu.memory_space<vmem>>, vector<16x128xbf16>,
    %c0_17 = arith.constant 0 : index
    %c0_18 = arith.constant 0 : index
    %38 = vector.load %arg8[%c0_17, %c0_18] : memref<16x128xf32, #tpu.memory_space<vmem>>, vector<16x128xf32>
    tpu.vector_store %arg8[%c0_17, %c0_18], %33 {strides = array<i32>} : memref<16x128xf32, #tpu.memory_space<vmem>>, vector<16x128xf32>,
    return
  }
  func.func @transform_0(%arg0: i32) -> (i32, i32) {
    %c0_i32 = arith.constant 0 : i32
    %c0_i32_0 = arith.constant 0 : i32
    return %arg0, %c0_i32 : i32, i32
  }
  func.func @transform_1(%arg0: i32) -> (i32, i32) {
    %c0_i32 = arith.constant 0 : i32
    %c0_i32_0 = arith.constant 0 : i32
    return %arg0, %c0_i32 : i32, i32
  }
  func.func @transform_2(%arg0: i32) -> (i32, i32) {
    %c0_i32 = arith.constant 0 : i32
    %c0_i32_0 = arith.constant 0 : i32
    return %arg0, %c0_i32 : i32, i32
  }
  func.func @transform_3(%arg0: i32) -> (i32, i32) {
    %c0_i32 = arith.constant 0 : i32
    %c0_i32_0 = arith.constant 0 : i32
    %c0_i32_1 = arith.constant 0 : i32
    return %c0_i32, %c0_i32_0 : i32, i32
  }
  func.func @transform_4(%arg0: i32) -> (i32, i32) {
    %c0_i32 = arith.constant 0 : i32
    %c0_i32_0 = arith.constant 0 : i32
    %c0_i32_1 = arith.constant 0 : i32
    return %c0_i32, %c0_i32_0 : i32, i32
  }
  func.func @transform_5(%arg0: i32) -> (i32, i32) {
    %c0_i32 = arith.constant 0 : i32
    %c0_i32_0 = arith.constant 0 : i32
    %c0_i32_1 = arith.constant 0 : i32
    return %c0_i32, %c0_i32_0 : i32, i32
  }
  func.func @transform_6(%arg0: i32) -> (i32, i32) {
    %c0_i32 = arith.constant 0 : i32
    %c0_i32_0 = arith.constant 0 : i32
    return %arg0, %c0_i32 : i32, i32
  }
  func.func @transform_7(%arg0: i32) -> (i32, i32) {
    %c0_i32 = arith.constant 0 : i32
    %c0_i32_0 = arith.constant 0 : i32
    return %arg0, %c0_i32 : i32, i32
  }
}

</mosaic_0001>

<llo_original>
// kernel: tpu_custom_call.1
$region0: #{tpu_custom_call.1}
  #allocation0 [shape = 'u32[]', space=smem, size = 0x4, offset = 0x4, fixed_abs, tag = 'smem constant byte address 0x4 - core index']
  #allocation1 [shape = 'u32[72,128]{1,0:T(1,128)}', space=vmem, size = 0x9000, scoped, tag = 'internal scratch']
  %s0 = inlined_call_operand.hbm [shape: bf16[16,128], index: 0, kind: input, shape index: {}]
  %s1 = inlined_call_operand.hbm [shape: bf16[16,128], index: 1, kind: input, shape index: {}]
  %s2 = inlined_call_operand.hbm [shape: f32[16,128], index: 2, kind: input, shape index: {}]
  %s3 = inlined_call_operand.hbm [shape: bf16[128,512], index: 3, kind: input, shape index: {}]
  %s4 = inlined_call_operand.hbm [shape: bf16[128,512], index: 4, kind: input, shape index: {}]
  %s5 = inlined_call_operand.vmem [shape: f32[1,512], index: 5, kind: input, shape index: {}]
  %s6 = inlined_call_operand.hbm [shape: bf16[16,128], index: 6, kind: output, shape index: {0}]
  %s7 = inlined_call_operand.hbm [shape: f32[16,128], index: 7, kind: output, shape index: {1}]
  %8 = xla_tuple %s6, %s7
  %s9 = sld [smem:[#allocation0]]
  $region62: #{tpu_custom_call.1} parent=0
    _
  %s11 = ssub.s32 1, %s9
  %s12 = scalar_select 0, %s11, %s9
  $region1: #{tpu_custom_call.1} parent=0
    #allocation2 [shape = 'u8[4096]{0}', space=vmem, size = 0x1000, scoped, tag = 'input window, operand 0, single buffered']
    #allocation3 [shape = 's32[1]{0}', space=sflag, size = 0x4, scoped, tag = 'scoped memory for tpu_custom_call.1']
    #allocation4 [shape = 's32[1]{0}', space=sflag, size = 0x4, scoped, tag = 'scoped memory for tpu_custom_call.1']
    #allocation5 [shape = 'u8[4096]{0}', space=vmem, size = 0x1000, scoped, tag = 'input window, operand 1, single buffered']
    #allocation6 [shape = 's32[1]{0}', space=sflag, size = 0x4, scoped, tag = 'scoped memory for tpu_custom_call.1']
    #allocation7 [shape = 'u8[8192]{0}', space=vmem, size = 0x2000, scoped, tag = 'input window, operand 2, single buffered']
    #allocation8 [shape = 'u8[131072]{0}', space=vmem, size = 0x20000, scoped, tag = 'input window, operand 3, single buffered']
    #allocation9 [shape = 's32[1]{0}', space=sflag, size = 0x4, scoped, tag = 'scoped memory for tpu_custom_call.1']
    #allocation10 [shape = 'u8[131072]{0}', space=vmem, size = 0x20000, scoped, tag = 'input window, operand 4, single buffered']
    #allocation11 [shape = 'u8[4096]{0}', space=vmem, size = 0x1000, scoped, tag = 'output window, operand 0, single buffered']
    #allocation12 [shape = 'u8[8192]{0}', space=vmem, size = 0x2000, scoped, tag = 'output window, operand 1, single buffered']
    #allocation13 [shape = 's32[1]{0}', space=sflag, size = 0x4, scoped, tag = 'scoped memory for tpu_custom_call.1']
    %13 = vsyncpa [#allocation3], 0
    %14 = vsyncpa [#allocation6], 0
    %15 = vsyncpa [#allocation9], 0
    %16 = vsyncpa [#allocation4], 0
    %17 = vsyncpa [#allocation13], 0
    // Predicated region
    $region2: #{tpu_custom_call.1} parent=1 // pred_check
      _
    $region3: #{tpu_custom_call.1} parent=1 // pred_check_branch
      %19 = sbr.rel (0) target = $region5
    $region4: #{tpu_custom_call.1} parent=1 // pred_region
      %21 = vsyncadd [#allocation3], 0
      %s22 = sshll.u32 %s0, 4
      %s23 = int_to_ptr.hbm [resolvable:$true] %s22
      %s24 = sshll.u32 [#allocation2], 4
      %s25 = int_to_ptr.vmem [resolvable:$true] %s24
      %30 = dma.hbm_to_vmem [thread:$0]  %s23, 128, %s25, [#allocation3], 64, 64, 4
    $region5: #{tpu_custom_call.1} parent=1 // pred_fallthru
      _
    // Predicated region
    $region6: #{tpu_custom_call.1} parent=1 // pred_check
      _
    $region7: #{tpu_custom_call.1} parent=1 // pred_check_branch
      %32 = sbr.rel (0) target = $region9
    $region8: #{tpu_custom_call.1} parent=1 // pred_region
      %34 = vsyncadd [#allocation6], 0
      %s35 = sshll.u32 %s1, 4
      %s36 = int_to_ptr.hbm [resolvable:$true] %s35
      %s37 = sshll.u32 [#allocation5], 4
      %s38 = int_to_ptr.vmem [resolvable:$true] %s37
      %43 = dma.hbm_to_vmem [thread:$0]  %s36, 128, %s38, [#allocation6], 64, 64, 4
    $region9: #{tpu_custom_call.1} parent=1 // pred_fallthru
      _
    // Predicated region
    $region10: #{tpu_custom_call.1} parent=1 // pred_check
      _
    $region11: #{tpu_custom_call.1} parent=1 // pred_check_branch
      %45 = sbr.rel (0) target = $region13
    $region12: #{tpu_custom_call.1} parent=1 // pred_region
      %47 = vsyncadd [#allocation6], 0
      %s48 = sshll.u32 %s2, 4
      %s49 = int_to_ptr.hbm [resolvable:$true] %s48
      %s50 = sshll.u32 [#allocation7], 4
      %s51 = int_to_ptr.vmem [resolvable:$true] %s50
      %56 = dma.hbm_to_vmem [thread:$0]  %s49, 256, %s51, [#allocation6], 128, 128, 8
    $region13: #{tpu_custom_call.1} parent=1 // pred_fallthru
      _
    // Predicated region
    $region14: #{tpu_custom_call.1} parent=1 // pred_check
      _
    $region15: #{tpu_custom_call.1} parent=1 // pred_check_branch
      %58 = sbr.rel (0) target = $region17
    $region16: #{tpu_custom_call.1} parent=1 // pred_region
      %60 = vsyncadd [#allocation9], 0
      %s61 = sshll.u32 %s3, 4
      %s62 = int_to_ptr.hbm [resolvable:$true] %s61
      %s63 = sshll.u32 [#allocation8], 4
      %s64 = int_to_ptr.vmem [resolvable:$true] %s63
      %69 = dma.hbm_to_vmem [thread:$0]  %s62, 4096, %s64, [#allocation9], 256, 256, 16
    $region17: #{tpu_custom_call.1} parent=1 // pred_fallthru
      _
    // Predicated region
    $region18: #{tpu_custom_call.1} parent=1 // pred_check
      _
    $region19: #{tpu_custom_call.1} parent=1 // pred_check_branch
      %71 = sbr.rel (0) target = $region21
    $region20: #{tpu_custom_call.1} parent=1 // pred_region
      %73 = vsyncadd [#allocation9], 0
      %s74 = sshll.u32 %s4, 4
      %s75 = int_to_ptr.hbm [resolvable:$true] %s74
      %s76 = sshll.u32 [#allocation10], 4
      %s77 = int_to_ptr.vmem [resolvable:$true] %s76
      %82 = dma.hbm_to_vmem [thread:$0]  %s75, 4096, %s77, [#allocation9], 256, 256, 16
    $region21: #{tpu_custom_call.1} parent=1 // pred_fallthru
      _
    // Predicated region
    $region22: #{tpu_custom_call.1} parent=1 // pred_check
      _
    $region23: #{tpu_custom_call.1} parent=1 // pred_check_branch
      %84 = sbr.rel (0) target = $region25
    $region24: #{tpu_custom_call.1} parent=1 // pred_region
      _
    $region25: #{tpu_custom_call.1} parent=1 // pred_fallthru
      _
    // Predicated region
    $region26: #{tpu_custom_call.1} parent=1 // pred_check
      _
    $region27: #{tpu_custom_call.1} parent=1 // pred_check_branch
      %86 = sbr.rel (0) target = $region29
    $region28: #{tpu_custom_call.1} parent=1 // pred_region
      %88 = dma.done [#allocation3], 128
    $region29: #{tpu_custom_call.1} parent=1 // pred_fallthru
      _
    // Predicated region
    $region30: #{tpu_custom_call.1} parent=1 // pred_check
      _
    $region31: #{tpu_custom_call.1} parent=1 // pred_check_branch
      %90 = sbr.rel (0) target = $region33
    $region32: #{tpu_custom_call.1} parent=1 // pred_region
      %92 = dma.done [#allocation6], 128
    $region33: #{tpu_custom_call.1} parent=1 // pred_fallthru
      _
    // Predicated region
    $region34: #{tpu_custom_call.1} parent=1 // pred_check
      _
    $region35: #{tpu_custom_call.1} parent=1 // pred_check_branch
      %94 = sbr.rel (0) target = $region37
    $region36: #{tpu_custom_call.1} parent=1 // pred_region
      %96 = dma.done [#allocation6], 256
    $region37: #{tpu_custom_call.1} parent=1 // pred_fallthru
      _
    // Predicated region
    $region38: #{tpu_custom_call.1} parent=1 // pred_check
      _
    $region39: #{tpu_custom_call.1} parent=1 // pred_check_branch
      %98 = sbr.rel (0) target = $region41
    $region40: #{tpu_custom_call.1} parent=1 // pred_region
      %100 = dma.done [#allocation9], 4096
    $region41: #{tpu_custom_call.1} parent=1 // pred_fallthru
      _
    // Predicated region
    $region42: #{tpu_custom_call.1} parent=1 // pred_check
      _
    $region43: #{tpu_custom_call.1} parent=1 // pred_check_branch
      %102 = sbr.rel (0) target = $region45
    $region44: #{tpu_custom_call.1} parent=1 // pred_region
      %104 = dma.done [#allocation9], 4096
    $region45: #{tpu_custom_call.1} parent=1 // pred_fallthru
      _
    %v105 = vld [vmem:[#allocation2] sm:$0xf]
    %v106 = vld [vmem:[#allocation2 + $0x4] sm:$0xf]
    %v107 = vld [vmem:[#allocation8] sm:$0xff]
    %v108 = vld [vmem:[#allocation8 + $0x8] sm:$0xff]
    %v109 = vld [vmem:[#allocation8 + $0x10] sm:$0xff]
    %v110 = vld [vmem:[#allocation8 + $0x18] sm:$0xff]
    %v111 = vld [vmem:[#allocation8 + $0x20] sm:$0xff]
    %v112 = vld [vmem:[#allocation8 + $0x28] sm:$0xff]
    %v113 = vld [vmem:[#allocation8 + $0x30] sm:$0xff]
    %v114 = vld [vmem:[#allocation8 + $0x38] sm:$0xff]
    %v115 = vld [vmem:[#allocation8 + $0x40] sm:$0xff]
    %v116 = vld [vmem:[#allocation8 + $0x48] sm:$0xff]
    %v117 = vld [vmem:[#allocation8 + $0x50] sm:$0xff]
    %v118 = vld [vmem:[#allocation8 + $0x58] sm:$0xff]
    %v119 = vld [vmem:[#allocation8 + $0x60] sm:$0xff]
    %v120 = vld [vmem:[#allocation8 + $0x68] sm:$0xff]
    %v121 = vld [vmem:[#allocation8 + $0x70] sm:$0xff]
    %v122 = vld [vmem:[#allocation8 + $0x78] sm:$0xff]
    %v123 = vld [vmem:[#allocation8 + $0x80] sm:$0xff]
    %v124 = vld [vmem:[#allocation8 + $0x88] sm:$0xff]
    %v125 = vld [vmem:[#allocation8 + $0x90] sm:$0xff]
    %v126 = vld [vmem:[#allocation8 + $0x98] sm:$0xff]
    %v127 = vld [vmem:[#allocation8 + $0xa0] sm:$0xff]
    %v128 = vld [vmem:[#allocation8 + $0xa8] sm:$0xff]
    %v129 = vld [vmem:[#allocation8 + $0xb0] sm:$0xff]
    %v130 = vld [vmem:[#allocation8 + $0xb8] sm:$0xff]
    %v131 = vld [vmem:[#allocation8 + $0xc0] sm:$0xff]
    %v132 = vld [vmem:[#allocation8 + $0xc8] sm:$0xff]
    %v133 = vld [vmem:[#allocation8 + $0xd0] sm:$0xff]
    %v134 = vld [vmem:[#allocation8 + $0xd8] sm:$0xff]
    %v135 = vld [vmem:[#allocation8 + $0xe0] sm:$0xff]
    %v136 = vld [vmem:[#allocation8 + $0xe8] sm:$0xff]
    %v137 = vld [vmem:[#allocation8 + $0xf0] sm:$0xff]
    %v138 = vld [vmem:[#allocation8 + $0xf8] sm:$0xff]
    %v139 = vld [vmem:[#allocation5] sm:$0xf]
    %v140 = vld [vmem:[#allocation5 + $0x4] sm:$0xf]
    %v141 = vld [vmem:[#allocation10] sm:$0xff]
    %v142 = vld [vmem:[#allocation10 + $0x8] sm:$0xff]
    %v143 = vld [vmem:[#allocation10 + $0x10] sm:$0xff]
    %v144 = vld [vmem:[#allocation10 + $0x18] sm:$0xff]
    %v145 = vld [vmem:[#allocation10 + $0x20] sm:$0xff]
    %v146 = vld [vmem:[#allocation10 + $0x28] sm:$0xff]
    %v147 = vld [vmem:[#allocation10 + $0x30] sm:$0xff]
    %v148 = vld [vmem:[#allocation10 + $0x38] sm:$0xff]
    %v149 = vld [vmem:[#allocation10 + $0x40] sm:$0xff]
    %v150 = vld [vmem:[#allocation10 + $0x48] sm:$0xff]
    %v151 = vld [vmem:[#allocation10 + $0x50] sm:$0xff]
    %v152 = vld [vmem:[#allocation10 + $0x58] sm:$0xff]
    %v153 = vld [vmem:[#allocation10 + $0x60] sm:$0xff]
    %v154 = vld [vmem:[#allocation10 + $0x68] sm:$0xff]
    %v155 = vld [vmem:[#allocation10 + $0x70] sm:$0xff]
    %v156 = vld [vmem:[#allocation10 + $0x78] sm:$0xff]
    %v157 = vld [vmem:[#allocation10 + $0x80] sm:$0xff]
    %v158 = vld [vmem:[#allocation10 + $0x88] sm:$0xff]
    %v159 = vld [vmem:[#allocation10 + $0x90] sm:$0xff]
    %v160 = vld [vmem:[#allocation10 + $0x98] sm:$0xff]
    %v161 = vld [vmem:[#allocation10 + $0xa0] sm:$0xff]
    %v162 = vld [vmem:[#allocation10 + $0xa8] sm:$0xff]
    %v163 = vld [vmem:[#allocation10 + $0xb0] sm:$0xff]
    %v164 = vld [vmem:[#allocation10 + $0xb8] sm:$0xff]
    %v165 = vld [vmem:[#allocation10 + $0xc0] sm:$0xff]
    %v166 = vld [vmem:[#allocation10 + $0xc8] sm:$0xff]
    %v167 = vld [vmem:[#allocation10 + $0xd0] sm:$0xff]
    %v168 = vld [vmem:[#allocation10 + $0xd8] sm:$0xff]
    %v169 = vld [vmem:[#allocation10 + $0xe0] sm:$0xff]
    %v170 = vld [vmem:[#allocation10 + $0xe8] sm:$0xff]
    %v171 = vld [vmem:[#allocation10 + $0xf0] sm:$0xff]
    %v172 = vld [vmem:[#allocation10 + $0xf8] sm:$0xff]
    %v175 = vunpack.c.l.b16 %v139
    %v176 = vunpack.c.l.b16 %v140
    %v177 = vpack.c.b16 %v176, %v175
    %v211 = vunpack.c.l.b16 %v141
    %v212 = vunpack.c.h.b16 %v141
    %v213 = vunpack.c.l.b16 %v142
    %v214 = vunpack.c.h.b16 %v142
    %v215 = vunpack.c.l.b16 %v143
    %v216 = vunpack.c.h.b16 %v143
    %v217 = vunpack.c.l.b16 %v144
    %v218 = vunpack.c.h.b16 %v144
    %v219 = vunpack.c.l.b16 %v145
    %v220 = vunpack.c.h.b16 %v145
    %v221 = vunpack.c.l.b16 %v146
    %v222 = vunpack.c.h.b16 %v146
    %v223 = vunpack.c.l.b16 %v147
    %v224 = vunpack.c.h.b16 %v147
    %v225 = vunpack.c.l.b16 %v148
    %v226 = vunpack.c.h.b16 %v148
    %v227 = vunpack.c.l.b16 %v149
    %v228 = vunpack.c.h.b16 %v149
    %v229 = vunpack.c.l.b16 %v150
    %v230 = vunpack.c.h.b16 %v150
    %v231 = vunpack.c.l.b16 %v151
    %v232 = vunpack.c.h.b16 %v151
    %v233 = vunpack.c.l.b16 %v152
    %v234 = vunpack.c.h.b16 %v152
    %v235 = vunpack.c.l.b16 %v153
    %v236 = vunpack.c.h.b16 %v153
    %v237 = vunpack.c.l.b16 %v154
    %v238 = vunpack.c.h.b16 %v154
    %v239 = vunpack.c.l.b16 %v155
    %v240 = vunpack.c.h.b16 %v155
    %v241 = vunpack.c.l.b16 %v156
    %v242 = vunpack.c.h.b16 %v156
    %v243 = vunpack.c.l.b16 %v157
    %v244 = vunpack.c.h.b16 %v157
    %v245 = vunpack.c.l.b16 %v158
    %v246 = vunpack.c.h.b16 %v158
    %v247 = vunpack.c.l.b16 %v159
    %v248 = vunpack.c.h.b16 %v159
    %v249 = vunpack.c.l.b16 %v160
    %v250 = vunpack.c.h.b16 %v160
    %v251 = vunpack.c.l.b16 %v161
    %v252 = vunpack.c.h.b16 %v161
    %v253 = vunpack.c.l.b16 %v162
    %v254 = vunpack.c.h.b16 %v162
    %v255 = vunpack.c.l.b16 %v163
    %v256 = vunpack.c.h.b16 %v163
    %v257 = vunpack.c.l.b16 %v164
    %v258 = vunpack.c.h.b16 %v164
    %v259 = vunpack.c.l.b16 %v165
    %v260 = vunpack.c.h.b16 %v165
    %v261 = vunpack.c.l.b16 %v166
    %v262 = vunpack.c.h.b16 %v166
    %v263 = vunpack.c.l.b16 %v167
    %v264 = vunpack.c.h.b16 %v167
    %v265 = vunpack.c.l.b16 %v168
    %v266 = vunpack.c.h.b16 %v168
    %v267 = vunpack.c.l.b16 %v169
    %v268 = vunpack.c.h.b16 %v169
    %v269 = vunpack.c.l.b16 %v170
    %v270 = vunpack.c.h.b16 %v170
    %v271 = vunpack.c.l.b16 %v171
    %v272 = vunpack.c.h.b16 %v171
    %v273 = vunpack.c.l.b16 %v172
    %v274 = vunpack.c.h.b16 %v172
    %v275 = vpack.c.b16 %v215, %v211
    %v276 = vpack.c.b16 %v216, %v212
    %v277 = vpack.c.b16 %v217, %v213
    %v278 = vpack.c.b16 %v218, %v214
    %v279 = vpack.c.b16 %v223, %v219
    %v280 = vpack.c.b16 %v224, %v220
    %v281 = vpack.c.b16 %v225, %v221
    %v282 = vpack.c.b16 %v226, %v222
    %v283 = vpack.c.b16 %v231, %v227
    %v284 = vpack.c.b16 %v232, %v228
    %v285 = vpack.c.b16 %v233, %v229
    %v286 = vpack.c.b16 %v234, %v230
    %v287 = vpack.c.b16 %v239, %v235
    %v288 = vpack.c.b16 %v240, %v236
    %v289 = vpack.c.b16 %v241, %v237
    %v290 = vpack.c.b16 %v242, %v238
    %v291 = vpack.c.b16 %v247, %v243
    %v292 = vpack.c.b16 %v248, %v244
    %v293 = vpack.c.b16 %v249, %v245
    %v294 = vpack.c.b16 %v250, %v246
    %v295 = vpack.c.b16 %v255, %v251
    %v296 = vpack.c.b16 %v256, %v252
    %v297 = vpack.c.b16 %v257, %v253
    %v298 = vpack.c.b16 %v258, %v254
    %v299 = vpack.c.b16 %v263, %v259
    %v300 = vpack.c.b16 %v264, %v260
    %v301 = vpack.c.b16 %v265, %v261
    %v302 = vpack.c.b16 %v266, %v262
    %v303 = vpack.c.b16 %v271, %v267
    %v304 = vpack.c.b16 %v272, %v268
    %v305 = vpack.c.b16 %v273, %v269
    %v306 = vpack.c.b16 %v274, %v270
    %339 = vmatpush.bf16.msra.mxu0 %v303
    %340 = vmatpush.bf16.msra.mxu0 %v299
    %341 = vmatpush.bf16.msra.mxu0 %v295
    %342 = vmatpush.bf16.msra.mxu0 %v291
    %343 = vmatpush.bf16.msra.mxu0 %v287
    %344 = vmatpush.bf16.msra.mxu0 %v283
    %345 = vmatpush.bf16.msra.mxu0 %v279
    %346 = vmatpush.bf16.msra.mxu0 %v275
    %347 = vmatmul.bf16.gmra.mxu0 %v177
    %v348 = vpop.f32.mrf.mxu0
    %v349 = vadd.f32 0.0, %v348
    %v350 = vpop.f32.mrf.mxu0
    %v351 = vadd.f32 0.0, %v350
    %352 = vdwg.mxu0
    %353 = vmatpush.bf16.msra.mxu0 %v304
    %354 = vmatpush.bf16.msra.mxu0 %v300
    %355 = vmatpush.bf16.msra.mxu0 %v296
    %356 = vmatpush.bf16.msra.mxu0 %v292
    %357 = vmatpush.bf16.msra.mxu0 %v288
    %358 = vmatpush.bf16.msra.mxu0 %v284
    %359 = vmatpush.bf16.msra.mxu0 %v280
    %360 = vmatpush.bf16.msra.mxu0 %v276
    %361 = vmatmul.bf16.gmra.mxu0 %v177
    %v362 = vpop.f32.mrf.mxu0
    %v363 = vadd.f32 0.0, %v362
    %v364 = vpop.f32.mrf.mxu0
    %v365 = vadd.f32 0.0, %v364
    %366 = vdwg.mxu0
    %367 = vmatpush.bf16.msra.mxu0 %v305
    %368 = vmatpush.bf16.msra.mxu0 %v301
    %369 = vmatpush.bf16.msra.mxu0 %v297
    %370 = vmatpush.bf16.msra.mxu0 %v293
    %371 = vmatpush.bf16.msra.mxu0 %v289
    %372 = vmatpush.bf16.msra.mxu0 %v285
    %373 = vmatpush.bf16.msra.mxu0 %v281
    %374 = vmatpush.bf16.msra.mxu0 %v277
    %375 = vmatmul.bf16.gmra.mxu0 %v177
    %v376 = vpop.f32.mrf.mxu0
    %v377 = vadd.f32 0.0, %v376
    %v378 = vpop.f32.mrf.mxu0
    %v379 = vadd.f32 0.0, %v378
    %380 = vdwg.mxu0
    %381 = vmatpush.bf16.msra.mxu0 %v306
    %382 = vmatpush.bf16.msra.mxu0 %v302
    %383 = vmatpush.bf16.msra.mxu0 %v298
    %384 = vmatpush.bf16.msra.mxu0 %v294
    %385 = vmatpush.bf16.msra.mxu0 %v290
    %386 = vmatpush.bf16.msra.mxu0 %v286
    %387 = vmatpush.bf16.msra.mxu0 %v282
    %388 = vmatpush.bf16.msra.mxu0 %v278
    %389 = vmatmul.bf16.gmra.mxu0 %v177
    %v390 = vpop.f32.mrf.mxu0
    %v391 = vadd.f32 0.0, %v390
    %v392 = vpop.f32.mrf.mxu0
    %v393 = vadd.f32 0.0, %v392
    %394 = vdwg.mxu0
    %v397 = vunpack.c.l.b16 %v105
    %v398 = vunpack.c.l.b16 %v106
    %v399 = vpack.c.b16 %v398, %v397
    %v433 = vunpack.c.l.b16 %v107
    %v434 = vunpack.c.h.b16 %v107
    %v435 = vunpack.c.l.b16 %v108
    %v436 = vunpack.c.h.b16 %v108
    %v437 = vunpack.c.l.b16 %v109
    %v438 = vunpack.c.h.b16 %v109
    %v439 = vunpack.c.l.b16 %v110
    %v440 = vunpack.c.h.b16 %v110
    %v441 = vunpack.c.l.b16 %v111
    %v442 = vunpack.c.h.b16 %v111
    %v443 = vunpack.c.l.b16 %v112
    %v444 = vunpack.c.h.b16 %v112
    %v445 = vunpack.c.l.b16 %v113
    %v446 = vunpack.c.h.b16 %v113
    %v447 = vunpack.c.l.b16 %v114
    %v448 = vunpack.c.h.b16 %v114
    %v449 = vunpack.c.l.b16 %v115
    %v450 = vunpack.c.h.b16 %v115
    %v451 = vunpack.c.l.b16 %v116
    %v452 = vunpack.c.h.b16 %v116
    %v453 = vunpack.c.l.b16 %v117
    %v454 = vunpack.c.h.b16 %v117
    %v455 = vunpack.c.l.b16 %v118
    %v456 = vunpack.c.h.b16 %v118
    %v457 = vunpack.c.l.b16 %v119
    %v458 = vunpack.c.h.b16 %v119
    %v459 = vunpack.c.l.b16 %v120
    %v460 = vunpack.c.h.b16 %v120
    %v461 = vunpack.c.l.b16 %v121
    %v462 = vunpack.c.h.b16 %v121
    %v463 = vunpack.c.l.b16 %v122
    %v464 = vunpack.c.h.b16 %v122
    %v465 = vunpack.c.l.b16 %v123
    %v466 = vunpack.c.h.b16 %v123
    %v467 = vunpack.c.l.b16 %v124
    %v468 = vunpack.c.h.b16 %v124
    %v469 = vunpack.c.l.b16 %v125
    %v470 = vunpack.c.h.b16 %v125
    %v471 = vunpack.c.l.b16 %v126
    %v472 = vunpack.c.h.b16 %v126
    %v473 = vunpack.c.l.b16 %v127
    %v474 = vunpack.c.h.b16 %v127
    %v475 = vunpack.c.l.b16 %v128
    %v476 = vunpack.c.h.b16 %v128
    %v477 = vunpack.c.l.b16 %v129
    %v478 = vunpack.c.h.b16 %v129
    %v479 = vunpack.c.l.b16 %v130
    %v480 = vunpack.c.h.b16 %v130
    %v481 = vunpack.c.l.b16 %v131
    %v482 = vunpack.c.h.b16 %v131
    %v483 = vunpack.c.l.b16 %v132
    %v484 = vunpack.c.h.b16 %v132
    %v485 = vunpack.c.l.b16 %v133
    %v486 = vunpack.c.h.b16 %v133
    %v487 = vunpack.c.l.b16 %v134
    %v488 = vunpack.c.h.b16 %v134
    %v489 = vunpack.c.l.b16 %v135
    %v490 = vunpack.c.h.b16 %v135
    %v491 = vunpack.c.l.b16 %v136
    %v492 = vunpack.c.h.b16 %v136
    %v493 = vunpack.c.l.b16 %v137
    %v494 = vunpack.c.h.b16 %v137
    %v495 = vunpack.c.l.b16 %v138
    %v496 = vunpack.c.h.b16 %v138
    %v497 = vpack.c.b16 %v437, %v433
    %v498 = vpack.c.b16 %v438, %v434
    %v499 = vpack.c.b16 %v439, %v435
    %v500 = vpack.c.b16 %v440, %v436
    %v501 = vpack.c.b16 %v445, %v441
    %v502 = vpack.c.b16 %v446, %v442
    %v503 = vpack.c.b16 %v447, %v443
    %v504 = vpack.c.b16 %v448, %v444
    %v505 = vpack.c.b16 %v453, %v449
    %v506 = vpack.c.b16 %v454, %v450
    %v507 = vpack.c.b16 %v455, %v451
    %v508 = vpack.c.b16 %v456, %v452
    %v509 = vpack.c.b16 %v461, %v457
    %v510 = vpack.c.b16 %v462, %v458
    %v511 = vpack.c.b16 %v463, %v459
    %v512 = vpack.c.b16 %v464, %v460
    %v513 = vpack.c.b16 %v469, %v465
    %v514 = vpack.c.b16 %v470, %v466
    %v515 = vpack.c.b16 %v471, %v467
    %v516 = vpack.c.b16 %v472, %v468
    %v517 = vpack.c.b16 %v477, %v473
    %v518 = vpack.c.b16 %v478, %v474
    %v519 = vpack.c.b16 %v479, %v475
    %v520 = vpack.c.b16 %v480, %v476
    %v521 = vpack.c.b16 %v485, %v481
    %v522 = vpack.c.b16 %v486, %v482
    %v523 = vpack.c.b16 %v487, %v483
    %v524 = vpack.c.b16 %v488, %v484
    %v525 = vpack.c.b16 %v493, %v489
    %v526 = vpack.c.b16 %v494, %v490
    %v527 = vpack.c.b16 %v495, %v491
    %v528 = vpack.c.b16 %v496, %v492
    %561 = vmatpush.bf16.msra.mxu0 %v525
    %562 = vmatpush.bf16.msra.mxu0 %v521
    %563 = vmatpush.bf16.msra.mxu0 %v517
    %564 = vmatpush.bf16.msra.mxu0 %v513
    %565 = vmatpush.bf16.msra.mxu0 %v509
    %566 = vmatpush.bf16.msra.mxu0 %v505
    %567 = vmatpush.bf16.msra.mxu0 %v501
    %568 = vmatpush.bf16.msra.mxu0 %v497
    %569 = vmatmul.bf16.gmra.mxu0 %v399
    %v570 = vpop.f32.mrf.mxu0
    %v571 = vadd.f32 %v349, %v570
    %v572 = vpop.f32.mrf.mxu0
    %v573 = vadd.f32 %v351, %v572
    %574 = vdwg.mxu0
    %575 = vmatpush.bf16.msra.mxu0 %v526
    %576 = vmatpush.bf16.msra.mxu0 %v522
    %577 = vmatpush.bf16.msra.mxu0 %v518
    %578 = vmatpush.bf16.msra.mxu0 %v514
    %579 = vmatpush.bf16.msra.mxu0 %v510
    %580 = vmatpush.bf16.msra.mxu0 %v506
    %581 = vmatpush.bf16.msra.mxu0 %v502
    %582 = vmatpush.bf16.msra.mxu0 %v498
    %583 = vmatmul.bf16.gmra.mxu0 %v399
    %v584 = vpop.f32.mrf.mxu0
    %v585 = vadd.f32 %v363, %v584
    %v586 = vpop.f32.mrf.mxu0
    %v587 = vadd.f32 %v365, %v586
    %588 = vdwg.mxu0
    %589 = vmatpush.bf16.msra.mxu0 %v527
    %590 = vmatpush.bf16.msra.mxu0 %v523
    %591 = vmatpush.bf16.msra.mxu0 %v519
    %592 = vmatpush.bf16.msra.mxu0 %v515
    %593 = vmatpush.bf16.msra.mxu0 %v511
    %594 = vmatpush.bf16.msra.mxu0 %v507
    %595 = vmatpush.bf16.msra.mxu0 %v503
    %596 = vmatpush.bf16.msra.mxu0 %v499
    %597 = vmatmul.bf16.gmra.mxu0 %v399
    %v598 = vpop.f32.mrf.mxu0
    %v599 = vadd.f32 %v377, %v598
    %v600 = vpop.f32.mrf.mxu0
    %v601 = vadd.f32 %v379, %v600
    %602 = vdwg.mxu0
    %603 = vmatpush.bf16.msra.mxu0 %v528
    %604 = vmatpush.bf16.msra.mxu0 %v524
    %605 = vmatpush.bf16.msra.mxu0 %v520
    %606 = vmatpush.bf16.msra.mxu0 %v516
    %607 = vmatpush.bf16.msra.mxu0 %v512
    %608 = vmatpush.bf16.msra.mxu0 %v508
    %609 = vmatpush.bf16.msra.mxu0 %v504
    %610 = vmatpush.bf16.msra.mxu0 %v500
    %611 = vmatmul.bf16.gmra.mxu0 %v399
    %v612 = vpop.f32.mrf.mxu0
    %v613 = vadd.f32 %v391, %v612
    %v614 = vpop.f32.mrf.mxu0
    %v615 = vadd.f32 %v393, %v614
    %616 = vdwg.mxu0
    %v617 = vld [vmem:[%s5] sm:$0xf]
    %v619 = vperm.slane %v617, 0
    %v620 = vperm.slane %v617, 1
    %v621 = vperm.slane %v617, 2
    %v622 = vperm.slane %v617, 3
    %v627 = vadd.f32 %v571, %v619
    %v628 = vadd.f32 %v585, %v620
    %v629 = vadd.f32 %v599, %v621
    %v630 = vadd.f32 %v613, %v622
    %v631 = vadd.f32 %v573, %v619
    %v632 = vadd.f32 %v587, %v620
    %v633 = vadd.f32 %v601, %v621
    %v634 = vadd.f32 %v615, %v622
    %v635 = vxor.u32 %v627, 2147483648
    %v636 = vxor.u32 %v631, 2147483648
    %v637 = vmul.f32 %v635, 1.442695
    %v638 = vpow.pop %v637
    %v639 = vmul.f32 %v636, 1.442695
    %v640 = vpow.pop %v639
    %v641 = vadd.f32 %v638, 1.0
    %v642 = vadd.f32 %v640, 1.0
    %v643 = vrcp.pop %v641
    %v644 = vmul.f32 %v641, %v643
    %v645 = vsub.f32 1.0, %v644
    %v646 = vmul.f32 %v643, %v645
    %v647 = vadd.f32 %v643, %v646
    %vm648 = vweird.f32 %v641
    %vm649 = vweird.f32 %v643
    %vm650 = vmor %vm648, %vm649
    %v651 = vsel %vm650, %v643, %v647
    %v652 = vand.u32 2147483647, %v641
    %vm653 = vcmp.eq.f32.partialorder %v652, 8.507059e+37
    %v654 = vand.u32 %v641, 2147483648
    %v655 = vor.u32 1.1754944e-38, %v654
    %v656 = vsel %vm653, %v655, %v651
    %v657 = vmul.f32 1.0, %v656
    %v658 = vrcp.pop %v642
    %v659 = vmul.f32 %v642, %v658
    %v660 = vsub.f32 1.0, %v659
    %v661 = vmul.f32 %v658, %v660
    %v662 = vadd.f32 %v658, %v661
    %vm663 = vweird.f32 %v642
    %vm664 = vweird.f32 %v658
    %vm665 = vmor %vm663, %vm664
    %v666 = vsel %vm665, %v658, %v662
    %v667 = vand.u32 2147483647, %v642
    %vm668 = vcmp.eq.f32.partialorder %v667, 8.507059e+37
    %v669 = vand.u32 %v642, 2147483648
    %v670 = vor.u32 1.1754944e-38, %v669
    %v671 = vsel %vm668, %v670, %v666
    %v672 = vmul.f32 1.0, %v671
    %v673 = vxor.u32 %v628, 2147483648
    %v674 = vxor.u32 %v632, 2147483648
    %v675 = vmul.f32 %v673, 1.442695
    %v676 = vpow.pop %v675
    %v677 = vmul.f32 %v674, 1.442695
    %v678 = vpow.pop %v677
    %v679 = vadd.f32 %v676, 1.0
    %v680 = vadd.f32 %v678, 1.0
    %v681 = vrcp.pop %v679
    %v682 = vmul.f32 %v679, %v681
    %v683 = vsub.f32 1.0, %v682
    %v684 = vmul.f32 %v681, %v683
    %v685 = vadd.f32 %v681, %v684
    %vm686 = vweird.f32 %v679
    %vm687 = vweird.f32 %v681
    %vm688 = vmor %vm686, %vm687
    %v689 = vsel %vm688, %v681, %v685
    %v690 = vand.u32 2147483647, %v679
    %vm691 = vcmp.eq.f32.partialorder %v690, 8.507059e+37
    %v692 = vand.u32 %v679, 2147483648
    %v693 = vor.u32 1.1754944e-38, %v692
    %v694 = vsel %vm691, %v693, %v689
    %v695 = vmul.f32 1.0, %v694
    %v696 = vrcp.pop %v680
    %v697 = vmul.f32 %v680, %v696
    %v698 = vsub.f32 1.0, %v697
    %v699 = vmul.f32 %v696, %v698
    %v700 = vadd.f32 %v696, %v699
    %vm701 = vweird.f32 %v680
    %vm702 = vweird.f32 %v696
    %vm703 = vmor %vm701, %vm702
    %v704 = vsel %vm703, %v696, %v700
    %v705 = vand.u32 2147483647, %v680
    %vm706 = vcmp.eq.f32.partialorder %v705, 8.507059e+37
    %v707 = vand.u32 %v680, 2147483648
    %v708 = vor.u32 1.1754944e-38, %v707
    %v709 = vsel %vm706, %v708, %v704
    %v710 = vmul.f32 1.0, %v709
    %v711 = vtanh.pop %v629
    %v712 = vtanh.pop %v633
    %v713 = vxor.u32 %v630, 2147483648
    %v714 = vxor.u32 %v634, 2147483648
    %v715 = vmul.f32 %v713, 1.442695
    %v716 = vpow.pop %v715
    %v717 = vmul.f32 %v714, 1.442695
    %v718 = vpow.pop %v717
    %v719 = vadd.f32 %v716, 1.0
    %v720 = vadd.f32 %v718, 1.0
    %v721 = vrcp.pop %v719
    %v722 = vmul.f32 %v719, %v721
    %v723 = vsub.f32 1.0, %v722
    %v724 = vmul.f32 %v721, %v723
    %v725 = vadd.f32 %v721, %v724
    %vm726 = vweird.f32 %v719
    %vm727 = vweird.f32 %v721
    %vm728 = vmor %vm726, %vm727
    %v729 = vsel %vm728, %v721, %v725
    %v730 = vand.u32 2147483647, %v719
    %vm731 = vcmp.eq.f32.partialorder %v730, 8.507059e+37
    %v732 = vand.u32 %v719, 2147483648
    %v733 = vor.u32 1.1754944e-38, %v732
    %v734 = vsel %vm731, %v733, %v729
    %v735 = vmul.f32 1.0, %v734
    %v736 = vrcp.pop %v720
    %v737 = vmul.f32 %v720, %v736
    %v738 = vsub.f32 1.0, %v737
    %v739 = vmul.f32 %v736, %v738
    %v740 = vadd.f32 %v736, %v739
    %vm741 = vweird.f32 %v720
    %vm742 = vweird.f32 %v736
    %vm743 = vmor %vm741, %vm742
    %v744 = vsel %vm743, %v736, %v740
    %v745 = vand.u32 2147483647, %v720
    %vm746 = vcmp.eq.f32.partialorder %v745, 8.507059e+37
    %v747 = vand.u32 %v720, 2147483648
    %v748 = vor.u32 1.1754944e-38, %v747
    %v749 = vsel %vm746, %v748, %v744
    %v750 = vmul.f32 1.0, %v749
    %v751 = vld [vmem:[#allocation7] sm:$0xff]
    %v752 = vld [vmem:[#allocation7 + $0x8] sm:$0xff]
    %v753 = vmul.f32 %v695, %v751
    %v754 = vmul.f32 %v710, %v752
    %v755 = vmul.f32 %v657, %v711
    %v756 = vmul.f32 %v672, %v712
    %v757 = vadd.f32 %v753, %v755
    %v758 = vadd.f32 %v754, %v756
    %v759 = vtanh.pop %v757
    %v760 = vtanh.pop %v758
    %v761 = vmul.f32 %v735, %v759
    %v762 = vmul.f32 %v750, %v760
    %v763 = vpack.c.bf16 %v761, %v761
    %v764 = vpack.c.bf16 %v762, %v762
    %765 = vst [vmem:[#allocation11] sm:$0xf] %v763
    %766 = vst [vmem:[#allocation11 + $0x4] sm:$0xf] %v764
    %767 = vst [vmem:[#allocation12] sm:$0xff] %v757
    %768 = vst [vmem:[#allocation12 + $0x8] sm:$0xff] %v758
    // Predicated region
    $region46: #{tpu_custom_call.1} parent=1 // pred_check
      _
    $region47: #{tpu_custom_call.1} parent=1 // pred_check_branch
      %770 = sbr.rel (0) target = $region49
    $region48: #{tpu_custom_call.1} parent=1 // pred_region
      %772 = vsyncadd [#allocation4], 0
      %s773 = sshll.u32 [#allocation11], 4
      %s774 = int_to_ptr.vmem [resolvable:$true] %s773
      %s775 = sshll.u32 %s6, 4
      %s776 = int_to_ptr.hbm [resolvable:$true] %s775
      %781 = dma.vmem_to_hbm [thread:$0]  %s774, 128, %s776, [#allocation4], 64, 64, 4
    $region49: #{tpu_custom_call.1} parent=1 // pred_fallthru
      _
    // Predicated region
    $region50: #{tpu_custom_call.1} parent=1 // pred_check
      _
    $region51: #{tpu_custom_call.1} parent=1 // pred_check_branch
      %783 = sbr.rel (0) target = $region53
    $region52: #{tpu_custom_call.1} parent=1 // pred_region
      %785 = vsyncadd [#allocation13], 0
      %s786 = sshll.u32 [#allocation12], 4
      %s787 = int_to_ptr.vmem [resolvable:$true] %s786
      %s788 = sshll.u32 %s7, 4
      %s789 = int_to_ptr.hbm [resolvable:$true] %s788
      %794 = dma.vmem_to_hbm [thread:$0]  %s787, 256, %s789, [#allocation13], 128, 128, 8
    $region53: #{tpu_custom_call.1} parent=1 // pred_fallthru
      _
    // Predicated region
    $region54: #{tpu_custom_call.1} parent=1 // pred_check
      _
    $region55: #{tpu_custom_call.1} parent=1 // pred_check_branch
      %796 = sbr.rel (0) target = $region57
    $region56: #{tpu_custom_call.1} parent=1 // pred_region
      %798 = dma.done [#allocation4], 128
    $region57: #{tpu_custom_call.1} parent=1 // pred_fallthru
      _
    // Predicated region
    $region58: #{tpu_custom_call.1} parent=1 // pred_check
      _
    $region59: #{tpu_custom_call.1} parent=1 // pred_check_branch
      %800 = sbr.rel (0) target = $region61
    $region60: #{tpu_custom_call.1} parent=1 // pred_region
      %802 = dma.done [#allocation13], 256
    $region61: #{tpu_custom_call.1} parent=1 // pred_fallthru
      _
    %803 = vsyncpa [#allocation3], 1
    %804 = vsyncpa [#allocation6], 1
    %805 = vsyncpa [#allocation9], 1
    %806 = vsyncpa [#allocation4], 1
    %807 = vsyncpa [#allocation13], 1

// kernel: tpu_custom_call.1
$region0: #{tpu_custom_call.1}
  #allocation0 [shape = 'u32[]', space=smem, size = 0x4, offset = 0x4, fixed_abs, tag = 'smem constant byte address 0x4 - core index']
  #allocation1 [shape = 'u32[72,128]{1,0:T(1,128)}', space=vmem, size = 0x9000, scoped, tag = 'internal scratch']
  %s0 = inlined_call_operand.hbm [shape: bf16[16,128], index: 0, kind: input, shape index: {}]
  %s1 = inlined_call_operand.hbm [shape: bf16[16,128], index: 1, kind: input, shape index: {}]
  %s2 = inlined_call_operand.hbm [shape: f32[16,128], index: 2, kind: input, shape index: {}]
  %s3 = inlined_call_operand.hbm [shape: bf16[128,512], index: 3, kind: input, shape index: {}]
  %s4 = inlined_call_operand.hbm [shape: bf16[128,512], index: 4, kind: input, shape index: {}]
  %s5 = inlined_call_operand.vmem [shape: f32[1,512], index: 5, kind: input, shape index: {}]
  %s6 = inlined_call_operand.hbm [shape: bf16[16,128], index: 6, kind: output, shape index: {0}]
  %s7 = inlined_call_operand.hbm [shape: f32[16,128], index: 7, kind: output, shape index: {1}]
  %8 = xla_tuple %s6, %s7
  %s9 = sld [smem:[#allocation0]]
  $region62: #{tpu_custom_call.1} parent=0
    _
  %s11 = ssub.s32 1, %s9
  %s12 = scalar_select 0, %s11, %s9
  $region1: #{tpu_custom_call.1} parent=0
    #allocation2 [shape = 'u8[4096]{0}', space=vmem, size = 0x1000, scoped, tag = 'input window, operand 0, single buffered']
    #allocation3 [shape = 's32[1]{0}', space=sflag, size = 0x4, scoped, tag = 'scoped memory for tpu_custom_call.1']
    #allocation4 [shape = 's32[1]{0}', space=sflag, size = 0x4, scoped, tag = 'scoped memory for tpu_custom_call.1']
    #allocation5 [shape = 'u8[4096]{0}', space=vmem, size = 0x1000, scoped, tag = 'input window, operand 1, single buffered']
    #allocation6 [shape = 's32[1]{0}', space=sflag, size = 0x4, scoped, tag = 'scoped memory for tpu_custom_call.1']
    #allocation7 [shape = 'u8[8192]{0}', space=vmem, size = 0x2000, scoped, tag = 'input window, operand 2, single buffered']
    #allocation8 [shape = 'u8[131072]{0}', space=vmem, size = 0x20000, scoped, tag = 'input window, operand 3, single buffered']
    #allocation9 [shape = 's32[1]{0}', space=sflag, size = 0x4, scoped, tag = 'scoped memory for tpu_custom_call.1']
    #allocation10 [shape = 'u8[131072]{0}', space=vmem, size = 0x20000, scoped, tag = 'input window, operand 4, single buffered']
    #allocation11 [shape = 'u8[4096]{0}', space=vmem, size = 0x1000, scoped, tag = 'output window, operand 0, single buffered']
    #allocation12 [shape = 'u8[8192]{0}', space=vmem, size = 0x2000, scoped, tag = 'output window, operand 1, single buffered']
    #allocation13 [shape = 's32[1]{0}', space=sflag, size = 0x4, scoped, tag = 'scoped memory for tpu_custom_call.1']
    %13 = vsyncpa [#allocation3], 0
    %14 = vsyncpa [#allocation6], 0
    %15 = vsyncpa [#allocation9], 0
    %16 = vsyncpa [#allocation4], 0
    %17 = vsyncpa [#allocation13], 0
    // Predicated region
    $region2: #{tpu_custom_call.1} parent=1 // pred_check
      _
    $region3: #{tpu_custom_call.1} parent=1 // pred_check_branch
      %19 = sbr.rel (0) target = $region5
    $region4: #{tpu_custom_call.1} parent=1 // pred_region
      %21 = vsyncadd [#allocation3], 0
      %s22 = sshll.u32 %s0, 4
      %s23 = int_to_ptr.hbm [resolvable:$true] %s22
      %s24 = sshll.u32 [#allocation2], 4
      %s25 = int_to_ptr.vmem [resolvable:$true] %s24
      %30 = dma.hbm_to_vmem [thread:$0]  %s23, 128, %s25, [#allocation3], 64, 64, 4
    $region5: #{tpu_custom_call.1} parent=1 // pred_fallthru
      _
    // Predicated region
    $region6: #{tpu_custom_call.1} parent=1 // pred_check
      _
    $region7: #{tpu_custom_call.1} parent=1 // pred_check_branch
      %32 = sbr.rel (0) target = $region9
    $region8: #{tpu_custom_call.1} parent=1 // pred_region
      %34 = vsyncadd [#allocation6], 0
      %s35 = sshll.u32 %s1, 4
      %s36 = int_to_ptr.hbm [resolvable:$true] %s35
      %s37 = sshll.u32 [#allocation5], 4
      %s38 = int_to_ptr.vmem [resolvable:$true] %s37
      %43 = dma.hbm_to_vmem [thread:$0]  %s36, 128, %s38, [#allocation6], 64, 64, 4
    $region9: #{tpu_custom_call.1} parent=1 // pred_fallthru
      _
    // Predicated region
    $region10: #{tpu_custom_call.1} parent=1 // pred_check
      _
    $region11: #{tpu_custom_call.1} parent=1 // pred_check_branch
      %45 = sbr.rel (0) target = $region13
    $region12: #{tpu_custom_call.1} parent=1 // pred_region
      %47 = vsyncadd [#allocation6], 0
      %s48 = sshll.u32 %s2, 4
      %s49 = int_to_ptr.hbm [resolvable:$true] %s48
      %s50 = sshll.u32 [#allocation7], 4
      %s51 = int_to_ptr.vmem [resolvable:$true] %s50
      %56 = dma.hbm_to_vmem [thread:$0]  %s49, 256, %s51, [#allocation6], 128, 128, 8
    $region13: #{tpu_custom_call.1} parent=1 // pred_fallthru
      _
    // Predicated region
    $region14: #{tpu_custom_call.1} parent=1 // pred_check
      _
    $region15: #{tpu_custom_call.1} parent=1 // pred_check_branch
      %58 = sbr.rel (0) target = $region17
    $region16: #{tpu_custom_call.1} parent=1 // pred_region
      %60 = vsyncadd [#allocation9], 0
      %s61 = sshll.u32 %s3, 4
      %s62 = int_to_ptr.hbm [resolvable:$true] %s61
      %s63 = sshll.u32 [#allocation8], 4
      %s64 = int_to_ptr.vmem [resolvable:$true] %s63
      %69 = dma.hbm_to_vmem [thread:$0]  %s62, 4096, %s64, [#allocation9], 256, 256, 16
    $region17: #{tpu_custom_call.1} parent=1 // pred_fallthru
      _
    // Predicated region
    $region18: #{tpu_custom_call.1} parent=1 // pred_check
      _
    $region19: #{tpu_custom_call.1} parent=1 // pred_check_branch
      %71 = sbr.rel (0) target = $region21
    $region20: #{tpu_custom_call.1} parent=1 // pred_region
      %73 = vsyncadd [#allocation9], 0
      %s74 = sshll.u32 %s4, 4
      %s75 = int_to_ptr.hbm [resolvable:$true] %s74
      %s76 = sshll.u32 [#allocation10], 4
      %s77 = int_to_ptr.vmem [resolvable:$true] %s76
      %82 = dma.hbm_to_vmem [thread:$0]  %s75, 4096, %s77, [#allocation9], 256, 256, 16
    $region21: #{tpu_custom_call.1} parent=1 // pred_fallthru
      _
    // Predicated region
    $region22: #{tpu_custom_call.1} parent=1 // pred_check
      _
    $region23: #{tpu_custom_call.1} parent=1 // pred_check_branch
      %84 = sbr.rel (0) target = $region25
    $region24: #{tpu_custom_call.1} parent=1 // pred_region
      _
    $region25: #{tpu_custom_call.1} parent=1 // pred_fallthru
      _
    // Predicated region
    $region26: #{tpu_custom_call.1} parent=1 // pred_check
      _
    $region27: #{tpu_custom_call.1} parent=1 // pred_check_branch
      %86 = sbr.rel (0) target = $region29
    $region28: #{tpu_custom_call.1} parent=1 // pred_region
      %88 = dma.done [#allocation3], 128
    $region29: #{tpu_custom_call.1} parent=1 // pred_fallthru
      _
    // Predicated region
    $region30: #{tpu_custom_call.1} parent=1 // pred_check
      _
    $region31: #{tpu_custom_call.1} parent=1 // pred_check_branch
      %90 = sbr.rel (0) target = $region33
    $region32: #{tpu_custom_call.1} parent=1 // pred_region
      %92 = dma.done [#allocation6], 128
    $region33: #{tpu_custom_call.1} parent=1 // pred_fallthru
      _
    // Predicated region
    $region34: #{tpu_custom_call.1} parent=1 // pred_check
      _
    $region35: #{tpu_custom_call.1} parent=1 // pred_check_branch
      %94 = sbr.rel (0) target = $region37
    $region36: #{tpu_custom_call.1} parent=1 // pred_region
      %96 = dma.done [#allocation6], 256
    $region37: #{tpu_custom_call.1} parent=1 // pred_fallthru
      _
    // Predicated region
    $region38: #{tpu_custom_call.1} parent=1 // pred_check
      _
    $region39: #{tpu_custom_call.1} parent=1 // pred_check_branch
      %98 = sbr.rel (0) target = $region41
    $region40: #{tpu_custom_call.1} parent=1 // pred_region
      %100 = dma.done [#allocation9], 4096
    $region41: #{tpu_custom_call.1} parent=1 // pred_fallthru
      _
    // Predicated region
    $region42: #{tpu_custom_call.1} parent=1 // pred_check
      _
    $region43: #{tpu_custom_call.1} parent=1 // pred_check_branch
      %102 = sbr.rel (0) target = $region45
    $region44: #{tpu_custom_call.1} parent=1 // pred_region
      %104 = dma.done [#allocation9], 4096
    $region45: #{tpu_custom_call.1} parent=1 // pred_fallthru
      _
    %v105 = vld [vmem:[#allocation2] sm:$0xf]
    %v106 = vld [vmem:[#allocation2 + $0x4] sm:$0xf]
    %v107 = vld [vmem:[#allocation8] sm:$0xff]
    %v108 = vld [vmem:[#allocation8 + $0x8] sm:$0xff]
    %v109 = vld [vmem:[#allocation8 + $0x10] sm:$0xff]
    %v110 = vld [vmem:[#allocation8 + $0x18] sm:$0xff]
    %v111 = vld [vmem:[#allocation8 + $0x20] sm:$0xff]
    %v112 = vld [vmem:[#allocation8 + $0x28] sm:$0xff]
    %v113 = vld [vmem:[#allocation8 + $0x30] sm:$0xff]
    %v114 = vld [vmem:[#allocation8 + $0x38] sm:$0xff]
    %v115 = vld [vmem:[#allocation8 + $0x40] sm:$0xff]
    %v116 = vld [vmem:[#allocation8 + $0x48] sm:$0xff]
    %v117 = vld [vmem:[#allocation8 + $0x50] sm:$0xff]
    %v118 = vld [vmem:[#allocation8 + $0x58] sm:$0xff]
    %v119 = vld [vmem:[#allocation8 + $0x60] sm:$0xff]
    %v120 = vld [vmem:[#allocation8 + $0x68] sm:$0xff]
    %v121 = vld [vmem:[#allocation8 + $0x70] sm:$0xff]
    %v122 = vld [vmem:[#allocation8 + $0x78] sm:$0xff]
    %v123 = vld [vmem:[#allocation8 + $0x80] sm:$0xff]
    %v124 = vld [vmem:[#allocation8 + $0x88] sm:$0xff]
    %v125 = vld [vmem:[#allocation8 + $0x90] sm:$0xff]
    %v126 = vld [vmem:[#allocation8 + $0x98] sm:$0xff]
    %v127 = vld [vmem:[#allocation8 + $0xa0] sm:$0xff]
    %v128 = vld [vmem:[#allocation8 + $0xa8] sm:$0xff]
    %v129 = vld [vmem:[#allocation8 + $0xb0] sm:$0xff]
    %v130 = vld [vmem:[#allocation8 + $0xb8] sm:$0xff]
    %v131 = vld [vmem:[#allocation8 + $0xc0] sm:$0xff]
    %v132 = vld [vmem:[#allocation8 + $0xc8] sm:$0xff]
    %v133 = vld [vmem:[#allocation8 + $0xd0] sm:$0xff]
    %v134 = vld [vmem:[#allocation8 + $0xd8] sm:$0xff]
    %v135 = vld [vmem:[#allocation8 + $0xe0] sm:$0xff]
    %v136 = vld [vmem:[#allocation8 + $0xe8] sm:$0xff]
    %v137 = vld [vmem:[#allocation8 + $0xf0] sm:$0xff]
    %v138 = vld [vmem:[#allocation8 + $0xf8] sm:$0xff]
    %v139 = vld [vmem:[#allocation5] sm:$0xf]
    %v140 = vld [vmem:[#allocation5 + $0x4] sm:$0xf]
    %v141 = vld [vmem:[#allocation10] sm:$0xff]
    %v142 = vld [vmem:[#allocation10 + $0x8] sm:$0xff]
    %v143 = vld [vmem:[#allocation10 + $0x10] sm:$0xff]
    %v144 = vld [vmem:[#allocation10 + $0x18] sm:$0xff]
    %v145 = vld [vmem:[#allocation10 + $0x20] sm:$0xff]
    %v146 = vld [vmem:[#allocation10 + $0x28] sm:$0xff]
    %v147 = vld [vmem:[#allocation10 + $0x30] sm:$0xff]
    %v148 = vld [vmem:[#allocation10 + $0x38] sm:$0xff]
    %v149 = vld [vmem:[#allocation10 + $0x40] sm:$0xff]
    %v150 = vld [vmem:[#allocation10 + $0x48] sm:$0xff]
    %v151 = vld [vmem:[#allocation10 + $0x50] sm:$0xff]
    %v152 = vld [vmem:[#allocation10 + $0x58] sm:$0xff]
    %v153 = vld [vmem:[#allocation10 + $0x60] sm:$0xff]
    %v154 = vld [vmem:[#allocation10 + $0x68] sm:$0xff]
    %v155 = vld [vmem:[#allocation10 + $0x70] sm:$0xff]
    %v156 = vld [vmem:[#allocation10 + $0x78] sm:$0xff]
    %v157 = vld [vmem:[#allocation10 + $0x80] sm:$0xff]
    %v158 = vld [vmem:[#allocation10 + $0x88] sm:$0xff]
    %v159 = vld [vmem:[#allocation10 + $0x90] sm:$0xff]
    %v160 = vld [vmem:[#allocation10 + $0x98] sm:$0xff]
    %v161 = vld [vmem:[#allocation10 + $0xa0] sm:$0xff]
    %v162 = vld [vmem:[#allocation10 + $0xa8] sm:$0xff]
    %v163 = vld [vmem:[#allocation10 + $0xb0] sm:$0xff]
    %v164 = vld [vmem:[#allocation10 + $0xb8] sm:$0xff]
    %v165 = vld [vmem:[#allocation10 + $0xc0] sm:$0xff]
    %v166 = vld [vmem:[#allocation10 + $0xc8] sm:$0xff]
    %v167 = vld [vmem:[#allocation10 + $0xd0] sm:$0xff]
    %v168 = vld [vmem:[#allocation10 + $0xd8] sm:$0xff]
    %v169 = vld [vmem:[#allocation10 + $0xe0] sm:$0xff]
    %v170 = vld [vmem:[#allocation10 + $0xe8] sm:$0xff]
    %v171 = vld [vmem:[#allocation10 + $0xf0] sm:$0xff]
    %v172 = vld [vmem:[#allocation10 + $0xf8] sm:$0xff]
    %v175 = vunpack.c.l.b16 %v139
    %v176 = vunpack.c.l.b16 %v140
    %v177 = vpack.c.b16 %v176, %v175
    %v211 = vunpack.c.l.b16 %v141
    %v212 = vunpack.c.h.b16 %v141
    %v213 = vunpack.c.l.b16 %v142
    %v214 = vunpack.c.h.b16 %v142
    %v215 = vunpack.c.l.b16 %v143
    %v216 = vunpack.c.h.b16 %v143
    %v217 = vunpack.c.l.b16 %v144
    %v218 = vunpack.c.h.b16 %v144
    %v219 = vunpack.c.l.b16 %v145
    %v220 = vunpack.c.h.b16 %v145
    %v221 = vunpack.c.l.b16 %v146
    %v222 = vunpack.c.h.b16 %v146
    %v223 = vunpack.c.l.b16 %v147
    %v224 = vunpack.c.h.b16 %v147
    %v225 = vunpack.c.l.b16 %v148
    %v226 = vunpack.c.h.b16 %v148
    %v227 = vunpack.c.l.b16 %v149
    %v228 = vunpack.c.h.b16 %v149
    %v229 = vunpack.c.l.b16 %v150
    %v230 = vunpack.c.h.b16 %v150
    %v231 = vunpack.c.l.b16 %v151
    %v232 = vunpack.c.h.b16 %v151
    %v233 = vunpack.c.l.b16 %v152
    %v234 = vunpack.c.h.b16 %v152
    %v235 = vunpack.c.l.b16 %v153
    %v236 = vunpack.c.h.b16 %v153
    %v237 = vunpack.c.l.b16 %v154
    %v238 = vunpack.c.h.b16 %v154
    %v239 = vunpack.c.l.b16 %v155
    %v240 = vunpack.c.h.b16 %v155
    %v241 = vunpack.c.l.b16 %v156
    %v242 = vunpack.c.h.b16 %v156
    %v243 = vunpack.c.l.b16 %v157
    %v244 = vunpack.c.h.b16 %v157
    %v245 = vunpack.c.l.b16 %v158
    %v246 = vunpack.c.h.b16 %v158
    %v247 = vunpack.c.l.b16 %v159
    %v248 = vunpack.c.h.b16 %v159
    %v249 = vunpack.c.l.b16 %v160
    %v250 = vunpack.c.h.b16 %v160
    %v251 = vunpack.c.l.b16 %v161
    %v252 = vunpack.c.h.b16 %v161
    %v253 = vunpack.c.l.b16 %v162
    %v254 = vunpack.c.h.b16 %v162
    %v255 = vunpack.c.l.b16 %v163
    %v256 = vunpack.c.h.b16 %v163
    %v257 = vunpack.c.l.b16 %v164
    %v258 = vunpack.c.h.b16 %v164
    %v259 = vunpack.c.l.b16 %v165
    %v260 = vunpack.c.h.b16 %v165
    %v261 = vunpack.c.l.b16 %v166
    %v262 = vunpack.c.h.b16 %v166
    %v263 = vunpack.c.l.b16 %v167
    %v264 = vunpack.c.h.b16 %v167
    %v265 = vunpack.c.l.b16 %v168
    %v266 = vunpack.c.h.b16 %v168
    %v267 = vunpack.c.l.b16 %v169
    %v268 = vunpack.c.h.b16 %v169
    %v269 = vunpack.c.l.b16 %v170
    %v270 = vunpack.c.h.b16 %v170
    %v271 = vunpack.c.l.b16 %v171
    %v272 = vunpack.c.h.b16 %v171
    %v273 = vunpack.c.l.b16 %v172
    %v274 = vunpack.c.h.b16 %v172
    %v275 = vpack.c.b16 %v215, %v211
    %v276 = vpack.c.b16 %v216, %v212
    %v277 = vpack.c.b16 %v217, %v213
    %v278 = vpack.c.b16 %v218, %v214
    %v279 = vpack.c.b16 %v223, %v219
    %v280 = vpack.c.b16 %v224, %v220
    %v281 = vpack.c.b16 %v225, %v221
    %v282 = vpack.c.b16 %v226, %v222
    %v283 = vpack.c.b16 %v231, %v227
    %v284 = vpack.c.b16 %v232, %v228
    %v285 = vpack.c.b16 %v233, %v229
    %v286 = vpack.c.b16 %v234, %v230
    %v287 = vpack.c.b16 %v239, %v235
    %v288 = vpack.c.b16 %v240, %v236
    %v289 = vpack.c.b16 %v241, %v237
    %v290 = vpack.c.b16 %v242, %v238
    %v291 = vpack.c.b16 %v247, %v243
    %v292 = vpack.c.b16 %v248, %v244
    %v293 = vpack.c.b16 %v249, %v245
    %v294 = vpack.c.b16 %v250, %v246
    %v295 = vpack.c.b16 %v255, %v251
    %v296 = vpack.c.b16 %v256, %v252
    %v297 = vpack.c.b16 %v257, %v253
    %v298 = vpack.c.b16 %v258, %v254
    %v299 = vpack.c.b16 %v263, %v259
    %v300 = vpack.c.b16 %v264, %v260
    %v301 = vpack.c.b16 %v265, %v261
    %v302 = vpack.c.b16 %v266, %v262
    %v303 = vpack.c.b16 %v271, %v267
    %v304 = vpack.c.b16 %v272, %v268
    %v305 = vpack.c.b16 %v273, %v269
    %v306 = vpack.c.b16 %v274, %v270
    %339 = vmatpush.bf16.msra.mxu0 %v303
    %340 = vmatpush.bf16.msra.mxu0 %v299
    %341 = vmatpush.bf16.msra.mxu0 %v295
    %342 = vmatpush.bf16.msra.mxu0 %v291
    %343 = vmatpush.bf16.msra.mxu0 %v287
    %344 = vmatpush.bf16.msra.mxu0 %v283
    %345 = vmatpush.bf16.msra.mxu0 %v279
    %346 = vmatpush.bf16.msra.mxu0 %v275
    %347 = vmatmul.bf16.gmra.mxu0 %v177
    %v348 = vpop.f32.mrf.mxu0
    %v349 = vadd.f32 0.0, %v348
    %v350 = vpop.f32.mrf.mxu0
    %v351 = vadd.f32 0.0, %v350
    %352 = vdwg.mxu0
    %353 = vmatpush.bf16.msra.mxu0 %v304
    %354 = vmatpush.bf16.msra.mxu0 %v300
    %355 = vmatpush.bf16.msra.mxu0 %v296
    %356 = vmatpush.bf16.msra.mxu0 %v292
    %357 = vmatpush.bf16.msra.mxu0 %v288
    %358 = vmatpush.bf16.msra.mxu0 %v284
    %359 = vmatpush.bf16.msra.mxu0 %v280
    %360 = vmatpush.bf16.msra.mxu0 %v276
    %361 = vmatmul.bf16.gmra.mxu0 %v177
    %v362 = vpop.f32.mrf.mxu0
    %v363 = vadd.f32 0.0, %v362
    %v364 = vpop.f32.mrf.mxu0
    %v365 = vadd.f32 0.0, %v364
    %366 = vdwg.mxu0
    %367 = vmatpush.bf16.msra.mxu0 %v305
    %368 = vmatpush.bf16.msra.mxu0 %v301
    %369 = vmatpush.bf16.msra.mxu0 %v297
    %370 = vmatpush.bf16.msra.mxu0 %v293
    %371 = vmatpush.bf16.msra.mxu0 %v289
    %372 = vmatpush.bf16.msra.mxu0 %v285
    %373 = vmatpush.bf16.msra.mxu0 %v281
    %374 = vmatpush.bf16.msra.mxu0 %v277
    %375 = vmatmul.bf16.gmra.mxu0 %v177
    %v376 = vpop.f32.mrf.mxu0
    %v377 = vadd.f32 0.0, %v376
    %v378 = vpop.f32.mrf.mxu0
    %v379 = vadd.f32 0.0, %v378
    %380 = vdwg.mxu0
    %381 = vmatpush.bf16.msra.mxu0 %v306
    %382 = vmatpush.bf16.msra.mxu0 %v302
    %383 = vmatpush.bf16.msra.mxu0 %v298
    %384 = vmatpush.bf16.msra.mxu0 %v294
    %385 = vmatpush.bf16.msra.mxu0 %v290
    %386 = vmatpush.bf16.msra.mxu0 %v286
    %387 = vmatpush.bf16.msra.mxu0 %v282
    %388 = vmatpush.bf16.msra.mxu0 %v278
    %389 = vmatmul.bf16.gmra.mxu0 %v177
    %v390 = vpop.f32.mrf.mxu0
    %v391 = vadd.f32 0.0, %v390
    %v392 = vpop.f32.mrf.mxu0
    %v393 = vadd.f32 0.0, %v392
    %394 = vdwg.mxu0
    %v397 = vunpack.c.l.b16 %v105
    %v398 = vunpack.c.l.b16 %v106
    %v399 = vpack.c.b16 %v398, %v397
    %v433 = vunpack.c.l.b16 %v107
    %v434 = vunpack.c.h.b16 %v107
    %v435 = vunpack.c.l.b16 %v108
    %v436 = vunpack.c.h.b16 %v108
    %v437 = vunpack.c.l.b16 %v109
    %v438 = vunpack.c.h.b16 %v109
    %v439 = vunpack.c.l.b16 %v110
    %v440 = vunpack.c.h.b16 %v110
    %v441 = vunpack.c.l.b16 %v111
    %v442 = vunpack.c.h.b16 %v111
    %v443 = vunpack.c.l.b16 %v112
    %v444 = vunpack.c.h.b16 %v112
    %v445 = vunpack.c.l.b16 %v113
    %v446 = vunpack.c.h.b16 %v113
    %v447 = vunpack.c.l.b16 %v114
    %v448 = vunpack.c.h.b16 %v114
    %v449 = vunpack.c.l.b16 %v115
    %v450 = vunpack.c.h.b16 %v115
    %v451 = vunpack.c.l.b16 %v116
    %v452 = vunpack.c.h.b16 %v116
    %v453 = vunpack.c.l.b16 %v117
    %v454 = vunpack.c.h.b16 %v117
    %v455 = vunpack.c.l.b16 %v118
    %v456 = vunpack.c.h.b16 %v118
    %v457 = vunpack.c.l.b16 %v119
    %v458 = vunpack.c.h.b16 %v119
    %v459 = vunpack.c.l.b16 %v120
    %v460 = vunpack.c.h.b16 %v120
    %v461 = vunpack.c.l.b16 %v121
    %v462 = vunpack.c.h.b16 %v121
    %v463 = vunpack.c.l.b16 %v122
    %v464 = vunpack.c.h.b16 %v122
    %v465 = vunpack.c.l.b16 %v123
    %v466 = vunpack.c.h.b16 %v123
    %v467 = vunpack.c.l.b16 %v124
    %v468 = vunpack.c.h.b16 %v124
    %v469 = vunpack.c.l.b16 %v125
    %v470 = vunpack.c.h.b16 %v125
    %v471 = vunpack.c.l.b16 %v126
    %v472 = vunpack.c.h.b16 %v126
    %v473 = vunpack.c.l.b16 %v127
    %v474 = vunpack.c.h.b16 %v127
    %v475 = vunpack.c.l.b16 %v128
    %v476 = vunpack.c.h.b16 %v128
    %v477 = vunpack.c.l.b16 %v129
    %v478 = vunpack.c.h.b16 %v129
    %v479 = vunpack.c.l.b16 %v130
    %v480 = vunpack.c.h.b16 %v130
    %v481 = vunpack.c.l.b16 %v131
    %v482 = vunpack.c.h.b16 %v131
    %v483 = vunpack.c.l.b16 %v132
    %v484 = vunpack.c.h.b16 %v132
    %v485 = vunpack.c.l.b16 %v133
    %v486 = vunpack.c.h.b16 %v133
    %v487 = vunpack.c.l.b16 %v134
    %v488 = vunpack.c.h.b16 %v134
    %v489 = vunpack.c.l.b16 %v135
    %v490 = vunpack.c.h.b16 %v135
    %v491 = vunpack.c.l.b16 %v136
    %v492 = vunpack.c.h.b16 %v136
    %v493 = vunpack.c.l.b16 %v137
    %v494 = vunpack.c.h.b16 %v137
    %v495 = vunpack.c.l.b16 %v138
    %v496 = vunpack.c.h.b16 %v138
    %v497 = vpack.c.b16 %v437, %v433
    %v498 = vpack.c.b16 %v438, %v434
    %v499 = vpack.c.b16 %v439, %v435
    %v500 = vpack.c.b16 %v440, %v436
    %v501 = vpack.c.b16 %v445, %v441
    %v502 = vpack.c.b16 %v446, %v442
    %v503 = vpack.c.b16 %v447, %v443
    %v504 = vpack.c.b16 %v448, %v444
    %v505 = vpack.c.b16 %v453, %v449
    %v506 = vpack.c.b16 %v454, %v450
    %v507 = vpack.c.b16 %v455, %v451
    %v508 = vpack.c.b16 %v456, %v452
    %v509 = vpack.c.b16 %v461, %v457
    %v510 = vpack.c.b16 %v462, %v458
    %v511 = vpack.c.b16 %v463, %v459
    %v512 = vpack.c.b16 %v464, %v460
    %v513 = vpack.c.b16 %v469, %v465
    %v514 = vpack.c.b16 %v470, %v466
    %v515 = vpack.c.b16 %v471, %v467
    %v516 = vpack.c.b16 %v472, %v468
    %v517 = vpack.c.b16 %v477, %v473
    %v518 = vpack.c.b16 %v478, %v474
    %v519 = vpack.c.b16 %v479, %v475
    %v520 = vpack.c.b16 %v480, %v476
    %v521 = vpack.c.b16 %v485, %v481
    %v522 = vpack.c.b16 %v486, %v482
    %v523 = vpack.c.b16 %v487, %v483
    %v524 = vpack.c.b16 %v488, %v484
    %v525 = vpack.c.b16 %v493, %v489
    %v526 = vpack.c.b16 %v494, %v490
    %v527 = vpack.c.b16 %v495, %v491
    %v528 = vpack.c.b16 %v496, %v492
    %561 = vmatpush.bf16.msra.mxu0 %v525
    %562 = vmatpush.bf16.msra.mxu0 %v521
    %563 = vmatpush.bf16.msra.mxu0 %v517
    %564 = vmatpush.bf16.msra.mxu0 %v513
    %565 = vmatpush.bf16.msra.mxu0 %v509
    %566 = vmatpush.bf16.msra.mxu0 %v505
    %567 = vmatpush.bf16.msra.mxu0 %v501
    %568 = vmatpush.bf16.msra.mxu0 %v497
    %569 = vmatmul.bf16.gmra.mxu0 %v399
    %v570 = vpop.f32.mrf.mxu0
    %v571 = vadd.f32 %v349, %v570
    %v572 = vpop.f32.mrf.mxu0
    %v573 = vadd.f32 %v351, %v572
    %574 = vdwg.mxu0
    %575 = vmatpush.bf16.msra.mxu0 %v526
    %576 = vmatpush.bf16.msra.mxu0 %v522
    %577 = vmatpush.bf16.msra.mxu0 %v518
    %578 = vmatpush.bf16.msra.mxu0 %v514
    %579 = vmatpush.bf16.msra.mxu0 %v510
    %580 = vmatpush.bf16.msra.mxu0 %v506
    %581 = vmatpush.bf16.msra.mxu0 %v502
    %582 = vmatpush.bf16.msra.mxu0 %v498
    %583 = vmatmul.bf16.gmra.mxu0 %v399
    %v584 = vpop.f32.mrf.mxu0
    %v585 = vadd.f32 %v363, %v584
    %v586 = vpop.f32.mrf.mxu0
    %v587 = vadd.f32 %v365, %v586
    %588 = vdwg.mxu0
    %589 = vmatpush.bf16.msra.mxu0 %v527
    %590 = vmatpush.bf16.msra.mxu0 %v523
    %591 = vmatpush.bf16.msra.mxu0 %v519
    %592 = vmatpush.bf16.msra.mxu0 %v515
    %593 = vmatpush.bf16.msra.mxu0 %v511
    %594 = vmatpush.bf16.msra.mxu0 %v507
    %595 = vmatpush.bf16.msra.mxu0 %v503
    %596 = vmatpush.bf16.msra.mxu0 %v499
    %597 = vmatmul.bf16.gmra.mxu0 %v399
    %v598 = vpop.f32.mrf.mxu0
    %v599 = vadd.f32 %v377, %v598
    %v600 = vpop.f32.mrf.mxu0
    %v601 = vadd.f32 %v379, %v600
    %602 = vdwg.mxu0
    %603 = vmatpush.bf16.msra.mxu0 %v528
    %604 = vmatpush.bf16.msra.mxu0 %v524
    %605 = vmatpush.bf16.msra.mxu0 %v520
    %606 = vmatpush.bf16.msra.mxu0 %v516
    %607 = vmatpush.bf16.msra.mxu0 %v512
    %608 = vmatpush.bf16.msra.mxu0 %v508
    %609 = vmatpush.bf16.msra.mxu0 %v504
    %610 = vmatpush.bf16.msra.mxu0 %v500
    %611 = vmatmul.bf16.gmra.mxu0 %v399
    %v612 = vpop.f32.mrf.mxu0
    %v613 = vadd.f32 %v391, %v612
    %v614 = vpop.f32.mrf.mxu0
    %v615 = vadd.f32 %v393, %v614
    %616 = vdwg.mxu0
    %v617 = vld [vmem:[%s5] sm:$0xf]
    %v619 = vperm.slane %v617, 0
    %v620 = vperm.slane %v617, 1
    %v621 = vperm.slane %v617, 2
    %v622 = vperm.slane %v617, 3
    %v627 = vadd.f32 %v571, %v619
    %v628 = vadd.f32 %v585, %v620
    %v629 = vadd.f32 %v599, %v621
    %v630 = vadd.f32 %v613, %v622
    %v631 = vadd.f32 %v573, %v619
    %v632 = vadd.f32 %v587, %v620
    %v633 = vadd.f32 %v601, %v621
    %v634 = vadd.f32 %v615, %v622
    %v635 = vxor.u32 %v627, 2147483648
    %v636 = vxor.u32 %v631, 2147483648
    %v637 = vmul.f32 %v635, 1.442695
    %v638 = vpow.pop %v637
    %v639 = vmul.f32 %v636, 1.442695
    %v640 = vpow.pop %v639
    %v641 = vadd.f32 %v638, 1.0
    %v642 = vadd.f32 %v640, 1.0
    %v643 = vrcp.pop %v641
    %v644 = vmul.f32 %v641, %v643
    %v645 = vsub.f32 1.0, %v644
    %v646 = vmul.f32 %v643, %v645
    %v647 = vadd.f32 %v643, %v646
    %vm648 = vweird.f32 %v641
    %vm649 = vweird.f32 %v643
    %vm650 = vmor %vm648, %vm649
    %v651 = vsel %vm650, %v643, %v647
    %v652 = vand.u32 2147483647, %v641
    %vm653 = vcmp.eq.f32.partialorder %v652, 8.507059e+37
    %v654 = vand.u32 %v641, 2147483648
    %v655 = vor.u32 1.1754944e-38, %v654
    %v656 = vsel %vm653, %v655, %v651
    %v657 = vmul.f32 1.0, %v656
    %v658 = vrcp.pop %v642
    %v659 = vmul.f32 %v642, %v658
    %v660 = vsub.f32 1.0, %v659
    %v661 = vmul.f32 %v658, %v660
    %v662 = vadd.f32 %v658, %v661
    %vm663 = vweird.f32 %v642
    %vm664 = vweird.f32 %v658
    %vm665 = vmor %vm663, %vm664
    %v666 = vsel %vm665, %v658, %v662
    %v667 = vand.u32 2147483647, %v642
    %vm668 = vcmp.eq.f32.partialorder %v667, 8.507059e+37
    %v669 = vand.u32 %v642, 2147483648
    %v670 = vor.u32 1.1754944e-38, %v669
    %v671 = vsel %vm668, %v670, %v666
    %v672 = vmul.f32 1.0, %v671
    %v673 = vxor.u32 %v628, 2147483648
    %v674 = vxor.u32 %v632, 2147483648
    %v675 = vmul.f32 %v673, 1.442695
    %v676 = vpow.pop %v675
    %v677 = vmul.f32 %v674, 1.442695
    %v678 = vpow.pop %v677
    %v679 = vadd.f32 %v676, 1.0
    %v680 = vadd.f32 %v678, 1.0
    %v681 = vrcp.pop %v679
    %v682 = vmul.f32 %v679, %v681
    %v683 = vsub.f32 1.0, %v682
    %v684 = vmul.f32 %v681, %v683
    %v685 = vadd.f32 %v681, %v684
    %vm686 = vweird.f32 %v679
    %vm687 = vweird.f32 %v681
    %vm688 = vmor %vm686, %vm687
    %v689 = vsel %vm688, %v681, %v685
    %v690 = vand.u32 2147483647, %v679
    %vm691 = vcmp.eq.f32.partialorder %v690, 8.507059e+37
    %v692 = vand.u32 %v679, 2147483648
    %v693 = vor.u32 1.1754944e-38, %v692
    %v694 = vsel %vm691, %v693, %v689
    %v695 = vmul.f32 1.0, %v694
    %v696 = vrcp.pop %v680
    %v697 = vmul.f32 %v680, %v696
    %v698 = vsub.f32 1.0, %v697
    %v699 = vmul.f32 %v696, %v698
    %v700 = vadd.f32 %v696, %v699
    %vm701 = vweird.f32 %v680
    %vm702 = vweird.f32 %v696
    %vm703 = vmor %vm701, %vm702
    %v704 = vsel %vm703, %v696, %v700
    %v705 = vand.u32 2147483647, %v680
    %vm706 = vcmp.eq.f32.partialorder %v705, 8.507059e+37
    %v707 = vand.u32 %v680, 2147483648
    %v708 = vor.u32 1.1754944e-38, %v707
    %v709 = vsel %vm706, %v708, %v704
    %v710 = vmul.f32 1.0, %v709
    %v711 = vtanh.pop %v629
    %v712 = vtanh.pop %v633
    %v713 = vxor.u32 %v630, 2147483648
    %v714 = vxor.u32 %v634, 2147483648
    %v715 = vmul.f32 %v713, 1.442695
    %v716 = vpow.pop %v715
    %v717 = vmul.f32 %v714, 1.442695
    %v718 = vpow.pop %v717
    %v719 = vadd.f32 %v716, 1.0
    %v720 = vadd.f32 %v718, 1.0
    %v721 = vrcp.pop %v719
    %v722 = vmul.f32 %v719, %v721
    %v723 = vsub.f32 1.0, %v722
    %v724 = vmul.f32 %v721, %v723
    %v725 = vadd.f32 %v721, %v724
    %vm726 = vweird.f32 %v719
    %vm727 = vweird.f32 %v721
    %vm728 = vmor %vm726, %vm727
    %v729 = vsel %vm728, %v721, %v725
    %v730 = vand.u32 2147483647, %v719
    %vm731 = vcmp.eq.f32.partialorder %v730, 8.507059e+37
    %v732 = vand.u32 %v719, 2147483648
    %v733 = vor.u32 1.1754944e-38, %v732
    %v734 = vsel %vm731, %v733, %v729
    %v735 = vmul.f32 1.0, %v734
    %v736 = vrcp.pop %v720
    %v737 = vmul.f32 %v720, %v736
    %v738 = vsub.f32 1.0, %v737
    %v739 = vmul.f32 %v736, %v738
    %v740 = vadd.f32 %v736, %v739
    %vm741 = vweird.f32 %v720
    %vm742 = vweird.f32 %v736
    %vm743 = vmor %vm741, %vm742
    %v744 = vsel %vm743, %v736, %v740
    %v745 = vand.u32 2147483647, %v720
    %vm746 = vcmp.eq.f32.partialorder %v745, 8.507059e+37
    %v747 = vand.u32 %v720, 2147483648
    %v748 = vor.u32 1.1754944e-38, %v747
    %v749 = vsel %vm746, %v748, %v744
    %v750 = vmul.f32 1.0, %v749
    %v751 = vld [vmem:[#allocation7] sm:$0xff]
    %v752 = vld [vmem:[#allocation7 + $0x8] sm:$0xff]
    %v753 = vmul.f32 %v695, %v751
    %v754 = vmul.f32 %v710, %v752
    %v755 = vmul.f32 %v657, %v711
    %v756 = vmul.f32 %v672, %v712
    %v757 = vadd.f32 %v753, %v755
    %v758 = vadd.f32 %v754, %v756
    %v759 = vtanh.pop %v757
    %v760 = vtanh.pop %v758
    %v761 = vmul.f32 %v735, %v759
    %v762 = vmul.f32 %v750, %v760
    %v763 = vpack.c.bf16 %v761, %v761
    %v764 = vpack.c.bf16 %v762, %v762
    %765 = vst [vmem:[#allocation11] sm:$0xf] %v763
    %766 = vst [vmem:[#allocation11 + $0x4] sm:$0xf] %v764
    %767 = vst [vmem:[#allocation12] sm:$0xff] %v757
    %768 = vst [vmem:[#allocation12 + $0x8] sm:$0xff] %v758
    // Predicated region
    $region46: #{tpu_custom_call.1} parent=1 // pred_check
      _
    $region47: #{tpu_custom_call.1} parent=1 // pred_check_branch
      %770 = sbr.rel (0) target = $region49
    $region48: #{tpu_custom_call.1} parent=1 // pred_region
      %772 = vsyncadd [#allocation4], 0
      %s773 = sshll.u32 [#allocation11], 4
      %s774 = int_to_ptr.vmem [resolvable:$true] %s773
      %s775 = sshll.u32 %s6, 4
      %s776 = int_to_ptr.hbm [resolvable:$true] %s775
      %781 = dma.vmem_to_hbm [thread:$0]  %s774, 128, %s776, [#allocation4], 64, 64, 4
    $region49: #{tpu_custom_call.1} parent=1 // pred_fallthru
      _
    // Predicated region
    $region50: #{tpu_custom_call.1} parent=1 // pred_check
      _
    $region51: #{tpu_custom_call.1} parent=1 // pred_check_branch
      %783 = sbr.rel (0) target = $region53
    $region52: #{tpu_custom_call.1} parent=1 // pred_region
      %785 = vsyncadd [#allocation13], 0
      %s786 = sshll.u32 [#allocation12], 4
      %s787 = int_to_ptr.vmem [resolvable:$true] %s786
      %s788 = sshll.u32 %s7, 4
      %s789 = int_to_ptr.hbm [resolvable:$true] %s788
      %794 = dma.vmem_to_hbm [thread:$0]  %s787, 256, %s789, [#allocation13], 128, 128, 8
    $region53: #{tpu_custom_call.1} parent=1 // pred_fallthru
      _
    // Predicated region
    $region54: #{tpu_custom_call.1} parent=1 // pred_check
      _
    $region55: #{tpu_custom_call.1} parent=1 // pred_check_branch
      %796 = sbr.rel (0) target = $region57
    $region56: #{tpu_custom_call.1} parent=1 // pred_region
      %798 = dma.done [#allocation4], 128
    $region57: #{tpu_custom_call.1} parent=1 // pred_fallthru
      _
    // Predicated region
    $region58: #{tpu_custom_call.1} parent=1 // pred_check
      _
    $region59: #{tpu_custom_call.1} parent=1 // pred_check_branch
      %800 = sbr.rel (0) target = $region61
    $region60: #{tpu_custom_call.1} parent=1 // pred_region
      %802 = dma.done [#allocation13], 256
    $region61: #{tpu_custom_call.1} parent=1 // pred_fallthru
      _
    %803 = vsyncpa [#allocation3], 1
    %804 = vsyncpa [#allocation6], 1
    %805 = vsyncpa [#allocation9], 1
    %806 = vsyncpa [#allocation4], 1
    %807 = vsyncpa [#allocation13], 1

</llo_original>
